<compile_context>
chip_gen: v7x
topology: tpu7x:2x2x1
jax: 0.10.0
libtpu: 0.0.40
codegen_flags: <defaults>
</compile_context>

<pallas_src>
import jax
import jax.numpy as jnp
from jax.experimental import pallas as pl
from jax.experimental.pallas import tpu as pltpu

BN_EPS = 1e-5
LANE = 128


def _round_up(x: int, m: int) -> int:
    return (x + m - 1) // m * m


def _make_kernel(input_size: int):
    def kernel(x_ref, w_ref, b_ref, out_ref):
        # x_ref: (tile_b, input_size) f32
        # w_ref: (6, D, D) bf16, resident (constant index_map)
        # b_ref: (6, D) f32, resident
        h = x_ref[...].astype(jnp.bfloat16)

        # Layer 1: contract only over the real input_size rows of the padded slab
        # (static slice of a VMEM value; same MXU pass count as a full-K dot).
        w0 = w_ref[0]
        z = jnp.dot(h, w0[:input_size, :], preferred_element_type=jnp.float32)
        h = jnp.maximum(z + b_ref[0:1, :], 0.0).astype(jnp.bfloat16)

        # Layers 2-5: uniform 128x128 bf16 dots; padded lanes stay exactly zero.
        for l in range(1, 5):
            z = jnp.dot(h, w_ref[l], preferred_element_type=jnp.float32)
            h = jnp.maximum(z + b_ref[l:l + 1, :], 0.0).astype(jnp.bfloat16)

        # Output projection (no ReLU); lane-dense (tile_b, D) store.
        z = jnp.dot(h, w_ref[5], preferred_element_type=jnp.float32)
        out_ref[...] = (z + b_ref[5:6, :]).astype(out_ref.dtype)

    return kernel


def init_params(key, input_size: int, hidden_size: int):
    """PyTorch-layout params: per hidden block (W, b, gamma, beta, mean, var),
    then (W_out, b_out). Weights stored as (in_features, out_features).
    BN stats are made non-trivial so the BN->Linear fold is actually exercised."""
    dims = [
        (input_size, hidden_size),
        (hidden_size, hidden_size * 2),
        (hidden_size * 2, hidden_size * 4),
        (hidden_size * 4, hidden_size * 2),
        (hidden_size * 2, hidden_size),
        (hidden_size, input_size),
    ]
    params = []
    keys = jax.random.split(key, len(dims) * 6)
    ki = 0
    for li, (din, dout) in enumerate(dims):
        bound = 1.0 / jnp.sqrt(float(din))
        W = jax.random.uniform(keys[ki], (din, dout), jnp.float32,
                               minval=-bound, maxval=bound); ki += 1
        b = jax.random.uniform(keys[ki], (1, dout), jnp.float32,
                               minval=-bound, maxval=bound); ki += 1
        params += [W, b]
        if li < 5:
            gamma = 1.0 + 0.1 * jax.random.normal(keys[ki], (1, dout), jnp.float32); ki += 1
            beta = 0.1 * jax.random.normal(keys[ki], (1, dout), jnp.float32); ki += 1
            mean = 0.1 * jax.random.normal(keys[ki], (1, dout), jnp.float32); ki += 1
            var = jax.random.uniform(keys[ki], (1, dout), jnp.float32,
                                     minval=0.5, maxval=1.5); ki += 1
            params += [gamma, beta, mean, var]
        else:
            ki += 4
    return params


def fold_and_pack_params(params):
    """Fold each block's inference BN (y = a*r + c, applied AFTER ReLU) into the
    NEXT Linear:
        W'_{l+1} = diag(a_l) @ W_{l+1},   b'_{l+1} = c_l @ W_{l+1} + b_{l+1}.
    The fold is done in f32 (exact); weights are then zero-padded to a uniform
    (D, D) slab per layer, stacked, and cast to bf16 for single-pass MXU dots.
    Biases stay f32 and are packed into one (6, D) array.  Padded rows/cols are
    zero, so the padding is numerically exact."""
    fused_ws, fused_bs = [], []
    a_prev = c_prev = None
    idx = 0
    for li in range(6):
        if li < 5:
            W, b, g, be, m, v = params[idx:idx + 6]
            idx += 6
        else:
            W, b = params[idx], params[idx + 1]
            idx += 2
        W = W.astype(jnp.float32)
        b = b.reshape(-1).astype(jnp.float32)
        if a_prev is not None:
            b = b + c_prev @ W            # shift folds through the ORIGINAL W
            W = a_prev[:, None] * W       # scale folds into W rows
        fused_ws.append(W)
        fused_bs.append(b)
        if li < 5:
            g, be, m, v = (t.reshape(-1).astype(jnp.float32) for t in (g, be, m, v))
            a_prev = g * jax.lax.rsqrt(v + BN_EPS)   # eval BN(r) = a*r + c
            c_prev = be - m * a_prev

    d_pad = _round_up(max(max(W.shape[0], W.shape[1]) for W in fused_ws), LANE)
    w_stack = jnp.stack([
        jnp.pad(W, ((0, d_pad - W.shape[0]), (0, d_pad - W.shape[1])))
        for W in fused_ws
    ]).astype(jnp.bfloat16)                          # fold in f32, cast AFTER
    b_pack = jnp.stack([jnp.pad(b, (0, d_pad - b.shape[0])) for b in fused_bs])
    return w_stack, b_pack


def recommendation_nn_forward(x, params, *, tile_b: int = 1024, out_dtype=None):
    batch, input_size = x.shape
    out_dtype = x.dtype if out_dtype is None else out_dtype

    w_stack, b_pack = fold_and_pack_params(params)
    d_pad = int(w_stack.shape[-1])

    # --- batch tiling --------------------------------------------------------
    # Big tiles amortize the ~0.35us per-grid-step cost and the fixed 6-layer
    # MXU-drain / bias+ReLU epilogue bubbles (v5e/v6e), but keep >= 2 tiles
    # whenever the batch allows so v7x's two TensorCores both get work via the
    # "parallel" grid axis.
    batch8 = _round_up(batch, 8)
    tile_b = max(8, min(_round_up(tile_b, 8), batch8))
    if batch8 // tile_b < 2 and batch8 >= 16:
        tile_b = _round_up((batch8 + 1) // 2, 8)
    batch_padded = _round_up(batch, tile_b)
    n_tiles = batch_padded // tile_b
    if batch_padded != batch:
        x = jnp.pad(x, ((0, batch_padded - batch), (0, 0)))

    kernel = _make_kernel(input_size)

    out = pl.pallas_call(
        kernel,
        out_shape=jax.ShapeDtypeStruct((batch_padded, d_pad), out_dtype),
        grid_spec=pl.GridSpec(
            grid=(n_tiles,),
            in_specs=[
                pl.BlockSpec((tile_b, input_size), lambda i: (i, 0)),
                # constant index_map -> weight stack / biases stay resident in VMEM
                pl.BlockSpec(w_stack.shape, lambda i: (0, 0, 0)),
                pl.BlockSpec(b_pack.shape, lambda i: (0, 0)),
            ],
            out_specs=pl.BlockSpec((tile_b, d_pad), lambda i: (i, 0)),
        ),
        compiler_params=pltpu.CompilerParams(
            dimension_semantics=("parallel",),   # batch tiles shard across TCs on v7x
        ),
    )(x, w_stack, b_pack)

    return out[:batch, :input_size]


if __name__ == "__main__":
    key = jax.random.PRNGKey(0)
    k_x, k_p = jax.random.split(key)

    batch = 512          # -> 2 batch tiles of 256 (pipelined + megacore-parallel)
    input_size = 16
    hidden_size = 32

    x = jax.random.normal(k_x, (batch, input_size), jnp.float32)
    params = init_params(k_p, input_size, hidden_size)

    out = recommendation_nn_forward(x, params)
    jax.block_until_ready(out)
    assert out.shape == (batch, input_size), out.shape

    # pure-JAX eval-mode reference (un-folded BN, f32 everywhere) validates the
    # BN->Linear fold; tolerance sized for bf16 MXU operands.
    def ref_forward(x, params):
        h = x
        idx = 0
        for _ in range(5):
            W, b, g, be, m, v = params[idx:idx + 6]
            idx += 6
            h = jnp.maximum(h @ W + b, 0.0)
            h = (h - m) * jax.lax.rsqrt(v + BN_EPS) * g + be
        W, b = params[idx], params[idx + 1]
        return h @ W + b

    ref = ref_forward(x, params)
    assert jnp.allclose(out, ref, atol=2e-2, rtol=2e-2), \
        float(jnp.max(jnp.abs(out - ref)))

    print("KERNEL_OK")
</pallas_src>

<mosaic_0001>
module attributes {stable_mosaic.version = 11 : i64} {
  func.func @kernel(%arg0: i32, %arg1: memref<256x16xf32, #tpu.memory_space<vmem>>, %arg2: memref<6x128x128xbf16, #tpu.memory_space<vmem>>, %arg3: memref<6x128xf32, #tpu.memory_space<vmem>>, %arg4: memref<256x128xf32, #tpu.memory_space<vmem>>) attributes {dimension_semantics = [#tpu.dimension_semantics<parallel>], iteration_bounds = array<i64: 2>, scalar_prefetch = 0 : i64, scratch_operands = 0 : i64, tpu.core_type = #tpu.core_type<tc>, window_params = [{transform_indices = @transform_0, window_bounds = array<i64: 256, 16>}, {pipeline_mode = #tpu.pipeline_mode<synchronous>, transform_indices = @transform_1, window_bounds = array<i64: 6, 128, 128>}, {pipeline_mode = #tpu.pipeline_mode<synchronous>, transform_indices = @transform_2, window_bounds = array<i64: 6, 128>}, {transform_indices = @transform_3, window_bounds = array<i64: 256, 128>}]} {
    %c0 = arith.constant 0 : index
    %c0_0 = arith.constant 0 : index
    %0 = vector.load %arg1[%c0, %c0_0] : memref<256x16xf32, #tpu.memory_space<vmem>>, vector<256x16xf32>
    %1 = arith.truncf %0 : vector<256x16xf32> to vector<256x16xbf16>
    %c0_1 = arith.constant 0 : index
    %c0_2 = arith.constant 0 : index
    %c0_3 = arith.constant 0 : index
    %2 = vector.load %arg2[%c0_1, %c0_2, %c0_3] : memref<6x128x128xbf16, #tpu.memory_space<vmem>>, vector<1x128x128xbf16>
    %3 = vector.shape_cast %2 : vector<1x128x128xbf16> to vector<128x128xbf16>
    %4 = vector.extract_strided_slice %3 {offsets = [0, 0], sizes = [16, 128], strides = [1, 1]} : vector<128x128xbf16> to vector<16x128xbf16>
    %cst = arith.constant dense<0.000000e+00> : vector<256x128xf32>
    %5 = tpu.matmul %1, %4, %cst {dimension_numbers = #tpu.dot_dimension_numbers<[1], [0], [0], [1], [0, 0, 1, 1], [], []>} : vector<256x16xbf16>, vector<16x128xbf16>, vector<256x128xf32> -> vector<256x128xf32>
    %c0_4 = arith.constant 0 : index
    %c0_5 = arith.constant 0 : index
    %6 = vector.load %arg3[%c0_4, %c0_5] : memref<6x128xf32, #tpu.memory_space<vmem>>, vector<1x128xf32>
    %7 = vector.broadcast %6 : vector<1x128xf32> to vector<256x128xf32>
    %8 = arith.addf %5, %7 : vector<256x128xf32>
    %cst_6 = arith.constant 0.000000e+00 : f32
    %9 = vector.broadcast %cst_6 : f32 to vector<256x128xf32>
    %10 = arith.maximumf %8, %9 : vector<256x128xf32>
    %11 = arith.truncf %10 : vector<256x128xf32> to vector<256x128xbf16>
    %c1 = arith.constant 1 : index
    %c0_7 = arith.constant 0 : index
    %c0_8 = arith.constant 0 : index
    %12 = vector.load %arg2[%c1, %c0_7, %c0_8] : memref<6x128x128xbf16, #tpu.memory_space<vmem>>, vector<1x128x128xbf16>
    %13 = vector.shape_cast %12 : vector<1x128x128xbf16> to vector<128x128xbf16>
    %cst_9 = arith.constant dense<0.000000e+00> : vector<256x128xf32>
    %14 = tpu.matmul %11, %13, %cst_9 {dimension_numbers = #tpu.dot_dimension_numbers<[1], [0], [0], [1], [0, 0, 1, 1], [], []>} : vector<256x128xbf16>, vector<128x128xbf16>, vector<256x128xf32> -> vector<256x128xf32>
    %c1_10 = arith.constant 1 : index
    %c0_11 = arith.constant 0 : index
    %15 = vector.load %arg3[%c1_10, %c0_11] : memref<6x128xf32, #tpu.memory_space<vmem>>, vector<1x128xf32>
    %16 = vector.broadcast %15 : vector<1x128xf32> to vector<256x128xf32>
    %17 = arith.addf %14, %16 : vector<256x128xf32>
    %cst_12 = arith.constant 0.000000e+00 : f32
    %18 = vector.broadcast %cst_12 : f32 to vector<256x128xf32>
    %19 = arith.maximumf %17, %18 : vector<256x128xf32>
    %20 = arith.truncf %19 : vector<256x128xf32> to vector<256x128xbf16>
    %c2 = arith.constant 2 : index
    %c0_13 = arith.constant 0 : index
    %c0_14 = arith.constant 0 : index
    %21 = vector.load %arg2[%c2, %c0_13, %c0_14] : memref<6x128x128xbf16, #tpu.memory_space<vmem>>, vector<1x128x128xbf16>
    %22 = vector.shape_cast %21 : vector<1x128x128xbf16> to vector<128x128xbf16>
    %cst_15 = arith.constant dense<0.000000e+00> : vector<256x128xf32>
    %23 = tpu.matmul %20, %22, %cst_15 {dimension_numbers = #tpu.dot_dimension_numbers<[1], [0], [0], [1], [0, 0, 1, 1], [], []>} : vector<256x128xbf16>, vector<128x128xbf16>, vector<256x128xf32> -> vector<256x128xf32>
    %c2_16 = arith.constant 2 : index
    %c0_17 = arith.constant 0 : index
    %24 = vector.load %arg3[%c2_16, %c0_17] : memref<6x128xf32, #tpu.memory_space<vmem>>, vector<1x128xf32>
    %25 = vector.broadcast %24 : vector<1x128xf32> to vector<256x128xf32>
    %26 = arith.addf %23, %25 : vector<256x128xf32>
    %cst_18 = arith.constant 0.000000e+00 : f32
    %27 = vector.broadcast %cst_18 : f32 to vector<256x128xf32>
    %28 = arith.maximumf %26, %27 : vector<256x128xf32>
    %29 = arith.truncf %28 : vector<256x128xf32> to vector<256x128xbf16>
    %c3 = arith.constant 3 : index
    %c0_19 = arith.constant 0 : index
    %c0_20 = arith.constant 0 : index
    %30 = vector.load %arg2[%c3, %c0_19, %c0_20] : memref<6x128x128xbf16, #tpu.memory_space<vmem>>, vector<1x128x128xbf16>
    %31 = vector.shape_cast %30 : vector<1x128x128xbf16> to vector<128x128xbf16>
    %cst_21 = arith.constant dense<0.000000e+00> : vector<256x128xf32>
    %32 = tpu.matmul %29, %31, %cst_21 {dimension_numbers = #tpu.dot_dimension_numbers<[1], [0], [0], [1], [0, 0, 1, 1], [], []>} : vector<256x128xbf16>, vector<128x128xbf16>, vector<256x128xf32> -> vector<256x128xf32>
    %c3_22 = arith.constant 3 : index
    %c0_23 = arith.constant 0 : index
    %33 = vector.load %arg3[%c3_22, %c0_23] : memref<6x128xf32, #tpu.memory_space<vmem>>, vector<1x128xf32>
    %34 = vector.broadcast %33 : vector<1x128xf32> to vector<256x128xf32>
    %35 = arith.addf %32, %34 : vector<256x128xf32>
    %cst_24 = arith.constant 0.000000e+00 : f32
    %36 = vector.broadcast %cst_24 : f32 to vector<256x128xf32>
    %37 = arith.maximumf %35, %36 : vector<256x128xf32>
    %38 = arith.truncf %37 : vector<256x128xf32> to vector<256x128xbf16>
    %c4 = arith.constant 4 : index
    %c0_25 = arith.constant 0 : index
    %c0_26 = arith.constant 0 : index
    %39 = vector.load %arg2[%c4, %c0_25, %c0_26] : memref<6x128x128xbf16, #tpu.memory_space<vmem>>, vector<1x128x128xbf16>
    %40 = vector.shape_cast %39 : vector<1x128x128xbf16> to vector<128x128xbf16>
    %cst_27 = arith.constant dense<0.000000e+00> : vector<256x128xf32>
    %41 = tpu.matmul %38, %40, %cst_27 {dimension_numbers = #tpu.dot_dimension_numbers<[1], [0], [0], [1], [0, 0, 1, 1], [], []>} : vector<256x128xbf16>, vector<128x128xbf16>, vector<256x128xf32> -> vector<256x128xf32>
    %c4_28 = arith.constant 4 : index
    %c0_29 = arith.constant 0 : index
    %42 = vector.load %arg3[%c4_28, %c0_29] : memref<6x128xf32, #tpu.memory_space<vmem>>, vector<1x128xf32>
    %43 = vector.broadcast %42 : vector<1x128xf32> to vector<256x128xf32>
    %44 = arith.addf %41, %43 : vector<256x128xf32>
    %cst_30 = arith.constant 0.000000e+00 : f32
    %45 = vector.broadcast %cst_30 : f32 to vector<256x128xf32>
    %46 = arith.maximumf %44, %45 : vector<256x128xf32>
    %47 = arith.truncf %46 : vector<256x128xf32> to vector<256x128xbf16>
    %c5 = arith.constant 5 : index
    %c0_31 = arith.constant 0 : index
    %c0_32 = arith.constant 0 : index
    %48 = vector.load %arg2[%c5, %c0_31, %c0_32] : memref<6x128x128xbf16, #tpu.memory_space<vmem>>, vector<1x128x128xbf16>
    %49 = vector.shape_cast %48 : vector<1x128x128xbf16> to vector<128x128xbf16>
    %cst_33 = arith.constant dense<0.000000e+00> : vector<256x128xf32>
    %50 = tpu.matmul %47, %49, %cst_33 {dimension_numbers = #tpu.dot_dimension_numbers<[1], [0], [0], [1], [0, 0, 1, 1], [], []>} : vector<256x128xbf16>, vector<128x128xbf16>, vector<256x128xf32> -> vector<256x128xf32>
    %c5_34 = arith.constant 5 : index
    %c0_35 = arith.constant 0 : index
    %51 = vector.load %arg3[%c5_34, %c0_35] : memref<6x128xf32, #tpu.memory_space<vmem>>, vector<1x128xf32>
    %52 = vector.broadcast %51 : vector<1x128xf32> to vector<256x128xf32>
    %53 = arith.addf %50, %52 : vector<256x128xf32>
    %c0_36 = arith.constant 0 : index
    %c0_37 = arith.constant 0 : index
    %54 = vector.load %arg4[%c0_36, %c0_37] : memref<256x128xf32, #tpu.memory_space<vmem>>, vector<256x128xf32>
    tpu.vector_store %arg4[%c0_36, %c0_37], %53 {strides = array<i32>} : memref<256x128xf32, #tpu.memory_space<vmem>>, vector<256x128xf32>,
    return
  }
  func.func @transform_0(%arg0: i32) -> (i32, i32) {
    %c0_i32 = arith.constant 0 : i32
    %c0_i32_0 = arith.constant 0 : i32
    return %arg0, %c0_i32 : i32, i32
  }
  func.func @transform_1(%arg0: i32) -> (i32, i32, i32) {
    %c0_i32 = arith.constant 0 : i32
    %c0_i32_0 = arith.constant 0 : i32
    %c0_i32_1 = arith.constant 0 : i32
    %c0_i32_2 = arith.constant 0 : i32
    return %c0_i32, %c0_i32_0, %c0_i32_1 : i32, i32, i32
  }
  func.func @transform_2(%arg0: i32) -> (i32, i32) {
    %c0_i32 = arith.constant 0 : i32
    %c0_i32_0 = arith.constant 0 : i32
    %c0_i32_1 = arith.constant 0 : i32
    return %c0_i32, %c0_i32_0 : i32, i32
  }
  func.func @transform_3(%arg0: i32) -> (i32, i32) {
    %c0_i32 = arith.constant 0 : i32
    %c0_i32_0 = arith.constant 0 : i32
    return %arg0, %c0_i32 : i32, i32
  }
}

</mosaic_0001>

<llo_original>
// kernel: tpu_custom_call.1
$region0: #{tpu_custom_call.1}
  #allocation0 [shape = 'u32[]', space=smem, size = 0x4, offset = 0x4, fixed_abs, tag = 'smem constant byte address 0x4 - core index']
  #allocation1 [shape = 'u32[144,128]{1,0:T(1,128)}', space=vmem, size = 0x12000, scoped, tag = 'internal scratch']
  %s0 = inlined_call_operand.vmem [shape: f32[512,16], index: 0, kind: input, shape index: {}]
  %s1 = inlined_call_operand.vmem [shape: bf16[6,128,128], index: 1, kind: input, shape index: {}]
  %s2 = inlined_call_operand.vmem [shape: f32[6,128], index: 2, kind: input, shape index: {}]
  %s3 = inlined_call_operand.hbm [shape: f32[512,128], index: 3, kind: output, shape index: {}]
  %s4 = sld [smem:[#allocation0]]
  $region45: #{tpu_custom_call.1} parent=0
    _
  %s6 = ssub.s32 1, %s4
  %s7 = scalar_select 0, %s6, %s4
  $region1: #{tpu_custom_call.1} parent=0
    #allocation2 [shape = 'u8[262144]{0}', space=vmem, size = 0x40000, scoped, tag = 'output window, operand 0']
    #allocation3 [shape = 's32[2]{0}', space=sflag, size = 0x8, scoped, tag = 'scoped memory for tpu_custom_call.1']
    %8 = vsyncpa [#allocation3], 0
    %s9 = scalar_lea.sflag [#allocation3], 1
    %10 = vsyncpa %s9, 0
    loop: start=0, step=1, limit=4
    $region2: #{tpu_custom_call.1} parent=1 // loop_pre_header
      _
    $region3: #{tpu_custom_call.1} parent=1 // loop_header
      %s12 = sphi 0, %s16
      %p13 = scmp.ge.s32.totalorder %s12, 4
      %s22 = sphi 0, %s24
      %s25 = sphi 0, %s22
      %s26 = sphi 0, %s25
      %s42 = sphi 0, %s26
      %s46 = sphi 0, %s46
      %s48 = sphi 0, %s46
      %s49 = sphi 0, %s48
      %s63 = sphi 0, %s49
      %s67 = sphi 0, %s67
      %s69 = sphi 0, %s67
      %s70 = sphi 0, %s69
      %s84 = sphi 0, %s70
      %s90 = sphi 0, %s92
      %s93 = sphi 0, %s90
      %s94 = sphi 0, %s93
      %s110 = sphi 0, %s94
    $region4: #{tpu_custom_call.1} parent=1 // loop_header_branch
      %15 = sbr.rel (%p13) target = $region8
    $region5: #{tpu_custom_call.1} parent=1 // loop_body
      %s17 = ssub.s32 %s12, 1
      %s18 = ssub.s32 %s12, 2
      %s19 = sadd.s32 %s12, 1
      %s20 = ssub.s32 %s12, %s19
      %p21 = scmp.eq.s32.totalorder %s20, 0
      %s23 = sadd.s32 %s22, 1
      %s24 = scalar_select %p21, %s22, %s23
      %p27 = pneg %p21
      %p28 = scmp.eq.s32.totalorder %s12, 1
      %p29 = por %p27, %p28
      %p30 = scmp.ne.s32.totalorder %s22, %s25
      %p31 = scmp.eq.s32.totalorder %s12, 0
      %p32 = por %p30, %p31
      %p33 = scmp.ne.s32.totalorder %s22, %s25
      %p34 = scmp.eq.s32.totalorder %s17, 1
      %p35 = por %p33, %p34
      %p36 = scmp.ne.s32.totalorder %s25, %s26
      %p37 = scmp.eq.s32.totalorder %s17, 0
      %p38 = por %p36, %p37
      %p39 = scmp.ne.s32.totalorder %s25, %s26
      %p40 = scmp.eq.s32.totalorder %s18, 1
      %p41 = por %p39, %p40
      %p43 = scmp.ne.s32.totalorder %s26, %s42
      %p44 = scmp.eq.s32.totalorder %s18, 0
      %p45 = por %p43, %p44
      %s47 = sadd.s32 %s46, 1
      %p50 = scmp.eq.s32.totalorder %s12, 1
      %p51 = scmp.ne.s32.totalorder %s46, %s48
      %p52 = scmp.eq.s32.totalorder %s12, 0
      %p53 = por %p51, %p52
      %p54 = scmp.ne.s32.totalorder %s46, %s48
      %p55 = scmp.eq.s32.totalorder %s17, 1
      %p56 = por %p54, %p55
      %p57 = scmp.ne.s32.totalorder %s48, %s49
      %p58 = scmp.eq.s32.totalorder %s17, 0
      %p59 = por %p57, %p58
      %p60 = scmp.ne.s32.totalorder %s48, %s49
      %p61 = scmp.eq.s32.totalorder %s18, 1
      %p62 = por %p60, %p61
      %p64 = scmp.ne.s32.totalorder %s49, %s63
      %p65 = scmp.eq.s32.totalorder %s18, 0
      %p66 = por %p64, %p65
      %s68 = sadd.s32 %s67, 1
      %p71 = scmp.eq.s32.totalorder %s12, 1
      %p72 = scmp.ne.s32.totalorder %s67, %s69
      %p73 = scmp.eq.s32.totalorder %s12, 0
      %p74 = por %p72, %p73
      %p75 = scmp.ne.s32.totalorder %s67, %s69
      %p76 = scmp.eq.s32.totalorder %s17, 1
      %p77 = por %p75, %p76
      %p78 = scmp.ne.s32.totalorder %s69, %s70
      %p79 = scmp.eq.s32.totalorder %s17, 0
      %p80 = por %p78, %p79
      %p81 = scmp.ne.s32.totalorder %s69, %s70
      %p82 = scmp.eq.s32.totalorder %s18, 1
      %p83 = por %p81, %p82
      %p85 = scmp.ne.s32.totalorder %s70, %s84
      %p86 = scmp.eq.s32.totalorder %s18, 0
      %p87 = por %p85, %p86
      %s88 = ssub.s32 %s12, %s19
      %p89 = scmp.eq.s32.totalorder %s88, 0
      %s91 = sadd.s32 %s90, 1
      %s92 = scalar_select %p89, %s90, %s91
      %p95 = pneg %p89
      %p96 = scmp.eq.s32.totalorder %s12, 1
      %p97 = por %p95, %p96
      %p98 = scmp.ne.s32.totalorder %s90, %s93
      %p99 = scmp.eq.s32.totalorder %s12, 0
      %p100 = por %p98, %p99
      %p101 = scmp.ne.s32.totalorder %s90, %s93
      %p102 = scmp.eq.s32.totalorder %s17, 1
      %p103 = por %p101, %p102
      %p104 = scmp.ne.s32.totalorder %s93, %s94
      %p105 = scmp.eq.s32.totalorder %s17, 0
      %p106 = por %p104, %p105
      %p107 = scmp.ne.s32.totalorder %s93, %s94
      %p108 = scmp.eq.s32.totalorder %s18, 1
      %p109 = por %p107, %p108
      %p111 = scmp.ne.s32.totalorder %s94, %s110
      %p112 = scmp.eq.s32.totalorder %s18, 0
      %p113 = por %p111, %p112
      %p114 = scmp.le.s32.totalorder 1, %s12
      %p115 = scmp.lt.s32.totalorder %s12, 3
      %p116 = pnand %p114, %p115
      %p117 = pneg %p116
      // Predicated region
      $region9: #{tpu_custom_call.1} parent=5 // pred_check
        _
      $region10: #{tpu_custom_call.1} parent=5 // pred_check_branch
        %119 = sbr.rel (%p116) target = $region12
      $region11: #{tpu_custom_call.1} parent=5 // pred_region
        %s120 = ssub.s32 %s12, 1
        // Predicated region
        $region13: #{tpu_custom_call.1} parent=11 // pred_check
          %p121 = pneg %p59
        $region14: #{tpu_custom_call.1} parent=11 // pred_check_branch
          %123 = sbr.rel (%p121) target = $region16
        $region15: #{tpu_custom_call.1} parent=11 // pred_region
          _
        $region16: #{tpu_custom_call.1} parent=11 // pred_fallthru
          _
        // Predicated region
        $region17: #{tpu_custom_call.1} parent=11 // pred_check
          %p124 = pneg %p80
        $region18: #{tpu_custom_call.1} parent=11 // pred_check_branch
          %126 = sbr.rel (%p124) target = $region20
        $region19: #{tpu_custom_call.1} parent=11 // pred_region
          _
        $region20: #{tpu_custom_call.1} parent=11 // pred_fallthru
          _
      $region12: #{tpu_custom_call.1} parent=5 // pred_fallthru
        _
      %p127 = scmp.lt.s32.totalorder %s12, 2
      // Predicated region
      $region21: #{tpu_custom_call.1} parent=5 // pred_check
        %p128 = pneg %p127
      $region22: #{tpu_custom_call.1} parent=5 // pred_check_branch
        %130 = sbr.rel (%p128) target = $region24
      $region23: #{tpu_custom_call.1} parent=5 // pred_region
        // Predicated region
        $region25: #{tpu_custom_call.1} parent=23 // pred_check
          %p131 = pneg %p32
        $region26: #{tpu_custom_call.1} parent=23 // pred_check_branch
          %133 = sbr.rel (%p131) target = $region28
        $region27: #{tpu_custom_call.1} parent=23 // pred_region
          %s134 = smul.u32 32, %s12
          %p135 = scmp.lt.s32.totalorder %s134, 63
          %s136 = scalar_select %p135, %s134, 63
          %s137 = smul.addr %s136, 8
          %s138 = scalar_lea.vmem %s0, %s137
          %s139 = smul.u32 32, %s12
        $region28: #{tpu_custom_call.1} parent=23 // pred_fallthru
          _
      $region24: #{tpu_custom_call.1} parent=5 // pred_fallthru
        _
      %p140 = scmp.le.s32.totalorder 1, %s12
      %p141 = scmp.lt.s32.totalorder %s12, 3
      %p142 = pnand %p140, %p141
      %p143 = pneg %p142
      // Predicated region
      $region29: #{tpu_custom_call.1} parent=5 // pred_check
        _
      $region30: #{tpu_custom_call.1} parent=5 // pred_check_branch
        %145 = sbr.rel (%p142) target = $region32
      $region31: #{tpu_custom_call.1} parent=5 // pred_region
        %s146 = ssub.s32 %s12, 1
        %s147 = smul.u32 32, %s17
        %p148 = scmp.lt.s32.totalorder %s147, 63
        %s149 = scalar_select %p148, %s147, 63
        %s150 = smul.addr %s149, 8
        %s151 = scalar_lea.vmem %s0, %s150
        %p152 = pneg %p38
        %p153 = pneg %p35
        %p154 = pneg %p59
        %p155 = pneg %p56
        %p156 = pneg %p80
        %p157 = pneg %p77
        %p158 = pneg %p106
        %p159 = pneg %p103
        %s160 = sand.u32 %s93, 1
        %s161 = scalar_lea.sflag [#allocation3], %s160
        %s162 = sand.u32 %s93, 1
        %s163 = smul.addr %s162, 256
        %s164 = scalar_lea.vmem [#allocation2], %s163
        %s165 = smul.u32 32, %s17
        %p166 = scmp.lt.s32.totalorder %s165, 63
        %s167 = scalar_select %p166, %s165, 63
        %s168 = smul.addr %s167, 8
        %s169 = scalar_lea.vmem %s0, %s168
        %s170 = smul.u32 32, %s17
        %s171 = smul.u32 32, %s17
        %v173 = vld [vmem:[%s169] sm:$0xff]
        %v174 = vld [vmem:[%s169 + $0x8] sm:$0xff]
        %v175 = vld [vmem:[%s169 + $0x10] sm:$0xff]
        %v176 = vld [vmem:[%s169 + $0x18] sm:$0xff]
        %v177 = vld [vmem:[%s169 + $0x20] sm:$0xff]
        %v178 = vld [vmem:[%s169 + $0x28] sm:$0xff]
        %v179 = vld [vmem:[%s169 + $0x30] sm:$0xff]
        %v180 = vld [vmem:[%s169 + $0x38] sm:$0xff]
        %v181 = vld [vmem:[%s169 + $0x40] sm:$0xff]
        %v182 = vld [vmem:[%s169 + $0x48] sm:$0xff]
        %v183 = vld [vmem:[%s169 + $0x50] sm:$0xff]
        %v184 = vld [vmem:[%s169 + $0x58] sm:$0xff]
        %v185 = vld [vmem:[%s169 + $0x60] sm:$0xff]
        %v186 = vld [vmem:[%s169 + $0x68] sm:$0xff]
        %v187 = vld [vmem:[%s169 + $0x70] sm:$0xff]
        %v188 = vld [vmem:[%s169 + $0x78] sm:$0xff]
        %v189 = vld [vmem:[%s169 + $0x80] sm:$0xff]
        %v190 = vld [vmem:[%s169 + $0x88] sm:$0xff]
        %v191 = vld [vmem:[%s169 + $0x90] sm:$0xff]
        %v192 = vld [vmem:[%s169 + $0x98] sm:$0xff]
        %v193 = vld [vmem:[%s169 + $0xa0] sm:$0xff]
        %v194 = vld [vmem:[%s169 + $0xa8] sm:$0xff]
        %v195 = vld [vmem:[%s169 + $0xb0] sm:$0xff]
        %v196 = vld [vmem:[%s169 + $0xb8] sm:$0xff]
        %v197 = vld [vmem:[%s169 + $0xc0] sm:$0xff]
        %v198 = vld [vmem:[%s169 + $0xc8] sm:$0xff]
        %v199 = vld [vmem:[%s169 + $0xd0] sm:$0xff]
        %v200 = vld [vmem:[%s169 + $0xd8] sm:$0xff]
        %v201 = vld [vmem:[%s169 + $0xe0] sm:$0xff]
        %v202 = vld [vmem:[%s169 + $0xe8] sm:$0xff]
        %v203 = vld [vmem:[%s169 + $0xf0] sm:$0xff]
        %v204 = vld [vmem:[%s169 + $0xf8] sm:$0xff]
        %v205 = vpack.c.bf16 %v174, %v173
        %v206 = vpack.c.bf16 %v176, %v175
        %v207 = vpack.c.bf16 %v178, %v177
        %v208 = vpack.c.bf16 %v180, %v179
        %v209 = vpack.c.bf16 %v182, %v181
        %v210 = vpack.c.bf16 %v184, %v183
        %v211 = vpack.c.bf16 %v186, %v185
        %v212 = vpack.c.bf16 %v188, %v187
        %v213 = vpack.c.bf16 %v190, %v189
        %v214 = vpack.c.bf16 %v192, %v191
        %v215 = vpack.c.bf16 %v194, %v193
        %v216 = vpack.c.bf16 %v196, %v195
        %v217 = vpack.c.bf16 %v198, %v197
        %v218 = vpack.c.bf16 %v200, %v199
        %v219 = vpack.c.bf16 %v202, %v201
        %v220 = vpack.c.bf16 %v204, %v203
        %v221 = vld [vmem:[%s1] sm:$0xf]
        %v222 = vld [vmem:[%s1 + $0x4] sm:$0xf]
        %v223 = vld [vmem:[%s2] sm:$0x1]
        %v224 = vlaneseq
        %v225 = vshrl.u32 %v224, 7
        %v226 = vsub.s32 0, %v225
        %v227 = vrot.slane %v223, %v226
        %v230 = vunpack.c.l.b16 %v221
        %v231 = vunpack.c.l.b16 %v222
        %v232 = vpack.c.b16 %v231, %v230
        %vm234 = vcmask 130048
        %v236 = vsel %vm234, %v205, 0
        %v239 = vsel %vm234, %v206, 0
        %v242 = vsel %vm234, %v207, 0
        %v245 = vsel %vm234, %v208, 0
        %v248 = vsel %vm234, %v209, 0
        %v251 = vsel %vm234, %v210, 0
        %v254 = vsel %vm234, %v211, 0
        %v257 = vsel %vm234, %v212, 0
        %v260 = vsel %vm234, %v213, 0
        %v263 = vsel %vm234, %v214, 0
        %v266 = vsel %vm234, %v215, 0
        %v269 = vsel %vm234, %v216, 0
        %v272 = vsel %vm234, %v217, 0
        %v275 = vsel %vm234, %v218, 0
        %v278 = vsel %vm234, %v219, 0
        %v281 = vsel %vm234, %v220, 0
        %283 = vmatprep.subr.bf16.mxu0 0
        %284 = vmatpush1.bf16.msra.mxu0 %v232
        %285 = vmatprep.subr.bf16.mxu0 0
        %286 = vmatpush1.bf16.msra.mxu0 0
        %287 = vmatprep.subr.bf16.mxu0 0
        %288 = vmatpush1.bf16.msra.mxu0 0
        %289 = vmatprep.subr.bf16.mxu0 0
        %290 = vmatpush1.bf16.msra.mxu0 0
        %291 = vmatprep.subr.bf16.mxu0 0
        %292 = vmatpush1.bf16.msra.mxu0 0
        %293 = vmatprep.subr.bf16.mxu0 0
        %294 = vmatpush1.bf16.msra.mxu0 0
        %295 = vmatprep.subr.bf16.mxu0 0
        %296 = vmatpush1.bf16.msra.mxu0 0
        %297 = vmatprep.subr.bf16.mxu0 0
        %298 = vmatpush1.bf16.msra.mxu0 0
        %299 = vmatprep.subr.bf16.mxu0 0
        %300 = vmatpush1.bf16.msra.mxu0 0
        %301 = vmatprep.subr.bf16.mxu0 0
        %302 = vmatpush1.bf16.msra.mxu0 0
        %303 = vmatprep.subr.bf16.mxu0 0
        %304 = vmatpush1.bf16.msra.mxu0 0
        %305 = vmatprep.subr.bf16.mxu0 0
        %306 = vmatpush1.bf16.msra.mxu0 0
        %307 = vmatprep.subr.bf16.mxu0 0
        %308 = vmatpush1.bf16.msra.mxu0 0
        %309 = vmatprep.subr.bf16.mxu0 0
        %310 = vmatpush1.bf16.msra.mxu0 0
        %311 = vmatprep.subr.bf16.mxu0 0
        %312 = vmatpush1.bf16.msra.mxu0 0
        %313 = vmatprep.subr.bf16.mxu0 0
        %314 = vmatpush1.bf16.msra.mxu0 0
        %315 = vmatprep.mubr.bf16.mxu0 0
        %316 = vmatmul.mubr.bf16.gmra.mrb[0].mxu0 %v236
        %v317 = vpop.f32.mrb[0].mxu0
        %v318 = vadd.f32 %v227, %v317
        %v319 = vpop.f32.mrb[0].mxu0
        %v320 = vpop.f32.mrb[0].mxu0
        %v321 = vadd.f32 %v227, %v320
        %v322 = vpop.f32.mrb[0].mxu0
        %323 = vmatprep.mubr.bf16.mxu0 0
        %324 = vmatmul.mubr.bf16.gmra.mrb[0].mxu0 %v239
        %v325 = vpop.f32.mrb[0].mxu0
        %v326 = vadd.f32 %v227, %v325
        %v327 = vpop.f32.mrb[0].mxu0
        %v328 = vpop.f32.mrb[0].mxu0
        %v329 = vadd.f32 %v227, %v328
        %v330 = vpop.f32.mrb[0].mxu0
        %331 = vmatprep.mubr.bf16.mxu0 0
        %332 = vmatmul.mubr.bf16.gmra.mrb[0].mxu0 %v242
        %v333 = vpop.f32.mrb[0].mxu0
        %v334 = vadd.f32 %v227, %v333
        %v335 = vpop.f32.mrb[0].mxu0
        %v336 = vpop.f32.mrb[0].mxu0
        %v337 = vadd.f32 %v227, %v336
        %v338 = vpop.f32.mrb[0].mxu0
        %339 = vmatprep.mubr.bf16.mxu0 0
        %340 = vmatmul.mubr.bf16.gmra.mrb[0].mxu0 %v245
        %v341 = vpop.f32.mrb[0].mxu0
        %v342 = vadd.f32 %v227, %v341
        %v343 = vpop.f32.mrb[0].mxu0
        %v344 = vpop.f32.mrb[0].mxu0
        %v345 = vadd.f32 %v227, %v344
        %v346 = vpop.f32.mrb[0].mxu0
        %347 = vmatprep.mubr.bf16.mxu0 0
        %348 = vmatmul.mubr.bf16.gmra.mrb[0].mxu0 %v248
        %v349 = vpop.f32.mrb[0].mxu0
        %v350 = vadd.f32 %v227, %v349
        %v351 = vpop.f32.mrb[0].mxu0
        %v352 = vpop.f32.mrb[0].mxu0
        %v353 = vadd.f32 %v227, %v352
        %v354 = vpop.f32.mrb[0].mxu0
        %355 = vmatprep.mubr.bf16.mxu0 0
        %356 = vmatmul.mubr.bf16.gmra.mrb[0].mxu0 %v251
        %v357 = vpop.f32.mrb[0].mxu0
        %v358 = vadd.f32 %v227, %v357
        %v359 = vpop.f32.mrb[0].mxu0
        %v360 = vpop.f32.mrb[0].mxu0
        %v361 = vadd.f32 %v227, %v360
        %v362 = vpop.f32.mrb[0].mxu0
        %363 = vmatprep.mubr.bf16.mxu0 0
        %364 = vmatmul.mubr.bf16.gmra.mrb[0].mxu0 %v254
        %v365 = vpop.f32.mrb[0].mxu0
        %v366 = vadd.f32 %v227, %v365
        %v367 = vpop.f32.mrb[0].mxu0
        %v368 = vpop.f32.mrb[0].mxu0
        %v369 = vadd.f32 %v227, %v368
        %v370 = vpop.f32.mrb[0].mxu0
        %371 = vmatprep.mubr.bf16.mxu0 0
        %372 = vmatmul.mubr.bf16.gmra.mrb[0].mxu0 %v257
        %v373 = vpop.f32.mrb[0].mxu0
        %v374 = vadd.f32 %v227, %v373
        %v375 = vpop.f32.mrb[0].mxu0
        %v376 = vpop.f32.mrb[0].mxu0
        %v377 = vadd.f32 %v227, %v376
        %v378 = vpop.f32.mrb[0].mxu0
        %379 = vmatprep.mubr.bf16.mxu0 0
        %380 = vmatmul.mubr.bf16.gmra.mrb[0].mxu0 %v260
        %v381 = vpop.f32.mrb[0].mxu0
        %v382 = vadd.f32 %v227, %v381
        %v383 = vpop.f32.mrb[0].mxu0
        %v384 = vpop.f32.mrb[0].mxu0
        %v385 = vadd.f32 %v227, %v384
        %v386 = vpop.f32.mrb[0].mxu0
        %387 = vmatprep.mubr.bf16.mxu0 0
        %388 = vmatmul.mubr.bf16.gmra.mrb[0].mxu0 %v263
        %v389 = vpop.f32.mrb[0].mxu0
        %v390 = vadd.f32 %v227, %v389
        %v391 = vpop.f32.mrb[0].mxu0
        %v392 = vpop.f32.mrb[0].mxu0
        %v393 = vadd.f32 %v227, %v392
        %v394 = vpop.f32.mrb[0].mxu0
        %395 = vmatprep.mubr.bf16.mxu0 0
        %396 = vmatmul.mubr.bf16.gmra.mrb[0].mxu0 %v266
        %v397 = vpop.f32.mrb[0].mxu0
        %v398 = vadd.f32 %v227, %v397
        %v399 = vpop.f32.mrb[0].mxu0
        %v400 = vpop.f32.mrb[0].mxu0
        %v401 = vadd.f32 %v227, %v400
        %v402 = vpop.f32.mrb[0].mxu0
        %403 = vmatprep.mubr.bf16.mxu0 0
        %404 = vmatmul.mubr.bf16.gmra.mrb[0].mxu0 %v269
        %v405 = vpop.f32.mrb[0].mxu0
        %v406 = vadd.f32 %v227, %v405
        %v407 = vpop.f32.mrb[0].mxu0
        %v408 = vpop.f32.mrb[0].mxu0
        %v409 = vadd.f32 %v227, %v408
        %v410 = vpop.f32.mrb[0].mxu0
        %411 = vmatprep.mubr.bf16.mxu0 0
        %412 = vmatmul.mubr.bf16.gmra.mrb[0].mxu0 %v272
        %v413 = vpop.f32.mrb[0].mxu0
        %v414 = vadd.f32 %v227, %v413
        %v415 = vpop.f32.mrb[0].mxu0
        %v416 = vpop.f32.mrb[0].mxu0
        %v417 = vadd.f32 %v227, %v416
        %v418 = vpop.f32.mrb[0].mxu0
        %419 = vmatprep.mubr.bf16.mxu0 0
        %420 = vmatmul.mubr.bf16.gmra.mrb[0].mxu0 %v275
        %v421 = vpop.f32.mrb[0].mxu0
        %v422 = vadd.f32 %v227, %v421
        %v423 = vpop.f32.mrb[0].mxu0
        %v424 = vpop.f32.mrb[0].mxu0
        %v425 = vadd.f32 %v227, %v424
        %v426 = vpop.f32.mrb[0].mxu0
        %427 = vmatprep.mubr.bf16.mxu0 0
        %428 = vmatmul.mubr.bf16.gmra.mrb[0].mxu0 %v278
        %v429 = vpop.f32.mrb[0].mxu0
        %v430 = vadd.f32 %v227, %v429
        %v431 = vpop.f32.mrb[0].mxu0
        %v432 = vpop.f32.mrb[0].mxu0
        %v433 = vadd.f32 %v227, %v432
        %v434 = vpop.f32.mrb[0].mxu0
        %435 = vmatprep.mubr.bf16.mxu0 0
        %436 = vmatmul.mubr.bf16.gmra.mrb[0].mxu0 %v281
        %v437 = vpop.f32.mrb[0].mxu0
        %v438 = vadd.f32 %v227, %v437
        %v439 = vpop.f32.mrb[0].mxu0
        %v440 = vpop.f32.mrb[0].mxu0
        %v441 = vadd.f32 %v227, %v440
        %v442 = vpop.f32.mrb[0].mxu0
        %443 = vdwg.mxu0
        %v444 = vmax.f32 %v318, 0.0
        %v445 = vmax.f32 %v321, 0.0
        %v446 = vmax.f32 %v326, 0.0
        %v447 = vmax.f32 %v329, 0.0
        %v448 = vmax.f32 %v334, 0.0
        %v449 = vmax.f32 %v337, 0.0
        %v450 = vmax.f32 %v342, 0.0
        %v451 = vmax.f32 %v345, 0.0
        %v452 = vmax.f32 %v350, 0.0
        %v453 = vmax.f32 %v353, 0.0
        %v454 = vmax.f32 %v358, 0.0
        %v455 = vmax.f32 %v361, 0.0
        %v456 = vmax.f32 %v366, 0.0
        %v457 = vmax.f32 %v369, 0.0
        %v458 = vmax.f32 %v374, 0.0
        %v459 = vmax.f32 %v377, 0.0
        %v460 = vmax.f32 %v382, 0.0
        %v461 = vmax.f32 %v385, 0.0
        %v462 = vmax.f32 %v390, 0.0
        %v463 = vmax.f32 %v393, 0.0
        %v464 = vmax.f32 %v398, 0.0
        %v465 = vmax.f32 %v401, 0.0
        %v466 = vmax.f32 %v406, 0.0
        %v467 = vmax.f32 %v409, 0.0
        %v468 = vmax.f32 %v414, 0.0
        %v469 = vmax.f32 %v417, 0.0
        %v470 = vmax.f32 %v422, 0.0
        %v471 = vmax.f32 %v425, 0.0
        %v472 = vmax.f32 %v430, 0.0
        %v473 = vmax.f32 %v433, 0.0
        %v474 = vmax.f32 %v438, 0.0
        %v475 = vmax.f32 %v441, 0.0
        %v476 = vpack.c.bf16 %v445, %v444
        %v477 = vpack.c.bf16 %v447, %v446
        %v478 = vpack.c.bf16 %v449, %v448
        %v479 = vpack.c.bf16 %v451, %v450
        %v480 = vpack.c.bf16 %v453, %v452
        %v481 = vpack.c.bf16 %v455, %v454
        %v482 = vpack.c.bf16 %v457, %v456
        %v483 = vpack.c.bf16 %v459, %v458
        %v484 = vpack.c.bf16 %v461, %v460
        %v485 = vpack.c.bf16 %v463, %v462
        %v486 = vpack.c.bf16 %v465, %v464
        %v487 = vpack.c.bf16 %v467, %v466
        %v488 = vpack.c.bf16 %v469, %v468
        %v489 = vpack.c.bf16 %v471, %v470
        %v490 = vpack.c.bf16 %v473, %v472
        %v491 = vpack.c.bf16 %v475, %v474
        %s492 = scalar_lea.vmem %s1, 64
        %v493 = vld [vmem:[%s492] sm:$0xf]
        %v494 = vld [vmem:[%s492 + $0x4] sm:$0xf]
        %v495 = vld [vmem:[%s492 + $0x8] sm:$0xf]
        %v496 = vld [vmem:[%s492 + $0xc] sm:$0xf]
        %v497 = vld [vmem:[%s492 + $0x10] sm:$0xf]
        %v498 = vld [vmem:[%s492 + $0x14] sm:$0xf]
        %v499 = vld [vmem:[%s492 + $0x18] sm:$0xf]
        %v500 = vld [vmem:[%s492 + $0x1c] sm:$0xf]
        %v501 = vld [vmem:[%s492 + $0x20] sm:$0xf]
        %v502 = vld [vmem:[%s492 + $0x24] sm:$0xf]
        %v503 = vld [vmem:[%s492 + $0x28] sm:$0xf]
        %v504 = vld [vmem:[%s492 + $0x2c] sm:$0xf]
        %v505 = vld [vmem:[%s492 + $0x30] sm:$0xf]
        %v506 = vld [vmem:[%s492 + $0x34] sm:$0xf]
        %v507 = vld [vmem:[%s492 + $0x38] sm:$0xf]
        %v508 = vld [vmem:[%s492 + $0x3c] sm:$0xf]
        %v509 = vld [vmem:[%s2 + $0x1] sm:$0x1]
        %v510 = vlaneseq
        %v511 = vshrl.u32 %v510, 7
        %v512 = vsub.s32 0, %v511
        %v513 = vrot.slane %v509, %v512
        %v530 = vunpack.c.l.b16 %v493
        %v531 = vunpack.c.l.b16 %v494
        %v532 = vunpack.c.l.b16 %v495
        %v533 = vunpack.c.l.b16 %v496
        %v534 = vunpack.c.l.b16 %v497
        %v535 = vunpack.c.l.b16 %v498
        %v536 = vunpack.c.l.b16 %v499
        %v537 = vunpack.c.l.b16 %v500
        %v538 = vunpack.c.l.b16 %v501
        %v539 = vunpack.c.l.b16 %v502
        %v540 = vunpack.c.l.b16 %v503
        %v541 = vunpack.c.l.b16 %v504
        %v542 = vunpack.c.l.b16 %v505
        %v543 = vunpack.c.l.b16 %v506
        %v544 = vunpack.c.l.b16 %v507
        %v545 = vunpack.c.l.b16 %v508
        %v546 = vpack.c.b16 %v531, %v530
        %v547 = vpack.c.b16 %v533, %v532
        %v548 = vpack.c.b16 %v535, %v534
        %v549 = vpack.c.b16 %v537, %v536
        %v550 = vpack.c.b16 %v539, %v538
        %v551 = vpack.c.b16 %v541, %v540
        %v552 = vpack.c.b16 %v543, %v542
        %v553 = vpack.c.b16 %v545, %v544
        %562 = vmatprep.subr.bf16.mxu0 0
        %563 = vmatpush1.bf16.msra.mxu0 %v546
        %564 = vmatprep.subr.bf16.mxu0 0
        %565 = vmatpush1.bf16.msra.mxu0 %v547
        %566 = vmatprep.subr.bf16.mxu0 0
        %567 = vmatpush1.bf16.msra.mxu0 %v548
        %568 = vmatprep.subr.bf16.mxu0 0
        %569 = vmatpush1.bf16.msra.mxu0 %v549
        %570 = vmatprep.subr.bf16.mxu0 0
        %571 = vmatpush1.bf16.msra.mxu0 %v550
        %572 = vmatprep.subr.bf16.mxu0 0
        %573 = vmatpush1.bf16.msra.mxu0 %v551
        %574 = vmatprep.subr.bf16.mxu0 0
        %575 = vmatpush1.bf16.msra.mxu0 %v552
        %576 = vmatprep.subr.bf16.mxu0 0
        %577 = vmatpush1.bf16.msra.mxu0 %v553
        %578 = vmatprep.subr.bf16.mxu0 0
        %579 = vmatpush1.bf16.msra.mxu0 0
        %580 = vmatprep.subr.bf16.mxu0 0
        %581 = vmatpush1.bf16.msra.mxu0 0
        %582 = vmatprep.subr.bf16.mxu0 0
        %583 = vmatpush1.bf16.msra.mxu0 0
        %584 = vmatprep.subr.bf16.mxu0 0
        %585 = vmatpush1.bf16.msra.mxu0 0
        %586 = vmatprep.subr.bf16.mxu0 0
        %587 = vmatpush1.bf16.msra.mxu0 0
        %588 = vmatprep.subr.bf16.mxu0 0
        %589 = vmatpush1.bf16.msra.mxu0 0
        %590 = vmatprep.subr.bf16.mxu0 0
        %591 = vmatpush1.bf16.msra.mxu0 0
        %592 = vmatprep.subr.bf16.mxu0 0
        %593 = vmatpush1.bf16.msra.mxu0 0
        %594 = vmatprep.mubr.bf16.mxu0 0
        %595 = vmatmul.mubr.bf16.gmra.mrb[0].mxu0 %v476
        %v596 = vpop.f32.mrb[0].mxu0
        %v597 = vadd.f32 %v513, %v596
        %v598 = vpop.f32.mrb[0].mxu0
        %v599 = vpop.f32.mrb[0].mxu0
        %v600 = vadd.f32 %v513, %v599
        %v601 = vpop.f32.mrb[0].mxu0
        %602 = vmatprep.mubr.bf16.mxu0 0
        %603 = vmatmul.mubr.bf16.gmra.mrb[0].mxu0 %v477
        %v604 = vpop.f32.mrb[0].mxu0
        %v605 = vadd.f32 %v513, %v604
        %v606 = vpop.f32.mrb[0].mxu0
        %v607 = vpop.f32.mrb[0].mxu0
        %v608 = vadd.f32 %v513, %v607
        %v609 = vpop.f32.mrb[0].mxu0
        %610 = vmatprep.mubr.bf16.mxu0 0
        %611 = vmatmul.mubr.bf16.gmra.mrb[0].mxu0 %v478
        %v612 = vpop.f32.mrb[0].mxu0
        %v613 = vadd.f32 %v513, %v612
        %v614 = vpop.f32.mrb[0].mxu0
        %v615 = vpop.f32.mrb[0].mxu0
        %v616 = vadd.f32 %v513, %v615
        %v617 = vpop.f32.mrb[0].mxu0
        %618 = vmatprep.mubr.bf16.mxu0 0
        %619 = vmatmul.mubr.bf16.gmra.mrb[0].mxu0 %v479
        %v620 = vpop.f32.mrb[0].mxu0
        %v621 = vadd.f32 %v513, %v620
        %v622 = vpop.f32.mrb[0].mxu0
        %v623 = vpop.f32.mrb[0].mxu0
        %v624 = vadd.f32 %v513, %v623
        %v625 = vpop.f32.mrb[0].mxu0
        %626 = vmatprep.mubr.bf16.mxu0 0
        %627 = vmatmul.mubr.bf16.gmra.mrb[0].mxu0 %v480
        %v628 = vpop.f32.mrb[0].mxu0
        %v629 = vadd.f32 %v513, %v628
        %v630 = vpop.f32.mrb[0].mxu0
        %v631 = vpop.f32.mrb[0].mxu0
        %v632 = vadd.f32 %v513, %v631
        %v633 = vpop.f32.mrb[0].mxu0
        %634 = vmatprep.mubr.bf16.mxu0 0
        %635 = vmatmul.mubr.bf16.gmra.mrb[0].mxu0 %v481
        %v636 = vpop.f32.mrb[0].mxu0
        %v637 = vadd.f32 %v513, %v636
        %v638 = vpop.f32.mrb[0].mxu0
        %v639 = vpop.f32.mrb[0].mxu0
        %v640 = vadd.f32 %v513, %v639
        %v641 = vpop.f32.mrb[0].mxu0
        %642 = vmatprep.mubr.bf16.mxu0 0
        %643 = vmatmul.mubr.bf16.gmra.mrb[0].mxu0 %v482
        %v644 = vpop.f32.mrb[0].mxu0
        %v645 = vadd.f32 %v513, %v644
        %v646 = vpop.f32.mrb[0].mxu0
        %v647 = vpop.f32.mrb[0].mxu0
        %v648 = vadd.f32 %v513, %v647
        %v649 = vpop.f32.mrb[0].mxu0
        %650 = vmatprep.mubr.bf16.mxu0 0
        %651 = vmatmul.mubr.bf16.gmra.mrb[0].mxu0 %v483
        %v652 = vpop.f32.mrb[0].mxu0
        %v653 = vadd.f32 %v513, %v652
        %v654 = vpop.f32.mrb[0].mxu0
        %v655 = vpop.f32.mrb[0].mxu0
        %v656 = vadd.f32 %v513, %v655
        %v657 = vpop.f32.mrb[0].mxu0
        %658 = vmatprep.mubr.bf16.mxu0 0
        %659 = vmatmul.mubr.bf16.gmra.mrb[0].mxu0 %v484
        %v660 = vpop.f32.mrb[0].mxu0
        %v661 = vadd.f32 %v513, %v660
        %v662 = vpop.f32.mrb[0].mxu0
        %v663 = vpop.f32.mrb[0].mxu0
        %v664 = vadd.f32 %v513, %v663
        %v665 = vpop.f32.mrb[0].mxu0
        %666 = vmatprep.mubr.bf16.mxu0 0
        %667 = vmatmul.mubr.bf16.gmra.mrb[0].mxu0 %v485
        %v668 = vpop.f32.mrb[0].mxu0
        %v669 = vadd.f32 %v513, %v668
        %v670 = vpop.f32.mrb[0].mxu0
        %v671 = vpop.f32.mrb[0].mxu0
        %v672 = vadd.f32 %v513, %v671
        %v673 = vpop.f32.mrb[0].mxu0
        %674 = vmatprep.mubr.bf16.mxu0 0
        %675 = vmatmul.mubr.bf16.gmra.mrb[0].mxu0 %v486
        %v676 = vpop.f32.mrb[0].mxu0
        %v677 = vadd.f32 %v513, %v676
        %v678 = vpop.f32.mrb[0].mxu0
        %v679 = vpop.f32.mrb[0].mxu0
        %v680 = vadd.f32 %v513, %v679
        %v681 = vpop.f32.mrb[0].mxu0
        %682 = vmatprep.mubr.bf16.mxu0 0
        %683 = vmatmul.mubr.bf16.gmra.mrb[0].mxu0 %v487
        %v684 = vpop.f32.mrb[0].mxu0
        %v685 = vadd.f32 %v513, %v684
        %v686 = vpop.f32.mrb[0].mxu0
        %v687 = vpop.f32.mrb[0].mxu0
        %v688 = vadd.f32 %v513, %v687
        %v689 = vpop.f32.mrb[0].mxu0
        %690 = vmatprep.mubr.bf16.mxu0 0
        %691 = vmatmul.mubr.bf16.gmra.mrb[0].mxu0 %v488
        %v692 = vpop.f32.mrb[0].mxu0
        %v693 = vadd.f32 %v513, %v692
        %v694 = vpop.f32.mrb[0].mxu0
        %v695 = vpop.f32.mrb[0].mxu0
        %v696 = vadd.f32 %v513, %v695
        %v697 = vpop.f32.mrb[0].mxu0
        %698 = vmatprep.mubr.bf16.mxu0 0
        %699 = vmatmul.mubr.bf16.gmra.mrb[0].mxu0 %v489
        %v700 = vpop.f32.mrb[0].mxu0
        %v701 = vadd.f32 %v513, %v700
        %v702 = vpop.f32.mrb[0].mxu0
        %v703 = vpop.f32.mrb[0].mxu0
        %v704 = vadd.f32 %v513, %v703
        %v705 = vpop.f32.mrb[0].mxu0
        %706 = vmatprep.mubr.bf16.mxu0 0
        %707 = vmatmul.mubr.bf16.gmra.mrb[0].mxu0 %v490
        %v708 = vpop.f32.mrb[0].mxu0
        %v709 = vadd.f32 %v513, %v708
        %v710 = vpop.f32.mrb[0].mxu0
        %v711 = vpop.f32.mrb[0].mxu0
        %v712 = vadd.f32 %v513, %v711
        %v713 = vpop.f32.mrb[0].mxu0
        %714 = vmatprep.mubr.bf16.mxu0 0
        %715 = vmatmul.mubr.bf16.gmra.mrb[0].mxu0 %v491
        %v716 = vpop.f32.mrb[0].mxu0
        %v717 = vadd.f32 %v513, %v716
        %v718 = vpop.f32.mrb[0].mxu0
        %v719 = vpop.f32.mrb[0].mxu0
        %v720 = vadd.f32 %v513, %v719
        %v721 = vpop.f32.mrb[0].mxu0
        %722 = vdwg.mxu0
        %v723 = vmax.f32 %v597, 0.0
        %v724 = vmax.f32 %v600, 0.0
        %v725 = vmax.f32 %v605, 0.0
        %v726 = vmax.f32 %v608, 0.0
        %v727 = vmax.f32 %v613, 0.0
        %v728 = vmax.f32 %v616, 0.0
        %v729 = vmax.f32 %v621, 0.0
        %v730 = vmax.f32 %v624, 0.0
        %v731 = vmax.f32 %v629, 0.0
        %v732 = vmax.f32 %v632, 0.0
        %v733 = vmax.f32 %v637, 0.0
        %v734 = vmax.f32 %v640, 0.0
        %v735 = vmax.f32 %v645, 0.0
        %v736 = vmax.f32 %v648, 0.0
        %v737 = vmax.f32 %v653, 0.0
        %v738 = vmax.f32 %v656, 0.0
        %v739 = vmax.f32 %v661, 0.0
        %v740 = vmax.f32 %v664, 0.0
        %v741 = vmax.f32 %v669, 0.0
        %v742 = vmax.f32 %v672, 0.0
        %v743 = vmax.f32 %v677, 0.0
        %v744 = vmax.f32 %v680, 0.0
        %v745 = vmax.f32 %v685, 0.0
        %v746 = vmax.f32 %v688, 0.0
        %v747 = vmax.f32 %v693, 0.0
        %v748 = vmax.f32 %v696, 0.0
        %v749 = vmax.f32 %v701, 0.0
        %v750 = vmax.f32 %v704, 0.0
        %v751 = vmax.f32 %v709, 0.0
        %v752 = vmax.f32 %v712, 0.0
        %v753 = vmax.f32 %v717, 0.0
        %v754 = vmax.f32 %v720, 0.0
        %v755 = vpack.c.bf16 %v724, %v723
        %v756 = vpack.c.bf16 %v726, %v725
        %v757 = vpack.c.bf16 %v728, %v727
        %v758 = vpack.c.bf16 %v730, %v729
        %v759 = vpack.c.bf16 %v732, %v731
        %v760 = vpack.c.bf16 %v734, %v733
        %v761 = vpack.c.bf16 %v736, %v735
        %v762 = vpack.c.bf16 %v738, %v737
        %v763 = vpack.c.bf16 %v740, %v739
        %v764 = vpack.c.bf16 %v742, %v741
        %v765 = vpack.c.bf16 %v744, %v743
        %v766 = vpack.c.bf16 %v746, %v745
        %v767 = vpack.c.bf16 %v748, %v747
        %v768 = vpack.c.bf16 %v750, %v749
        %v769 = vpack.c.bf16 %v752, %v751
        %v770 = vpack.c.bf16 %v754, %v753
        %s771 = scalar_lea.vmem %s1, 128
        %v772 = vld [vmem:[%s771] sm:$0xf]
        %v773 = vld [vmem:[%s771 + $0x4] sm:$0xf]
        %v774 = vld [vmem:[%s771 + $0x8] sm:$0xf]
        %v775 = vld [vmem:[%s771 + $0xc] sm:$0xf]
        %v776 = vld [vmem:[%s771 + $0x10] sm:$0xf]
        %v777 = vld [vmem:[%s771 + $0x14] sm:$0xf]
        %v778 = vld [vmem:[%s771 + $0x18] sm:$0xf]
        %v779 = vld [vmem:[%s771 + $0x1c] sm:$0xf]
        %v780 = vld [vmem:[%s771 + $0x20] sm:$0xf]
        %v781 = vld [vmem:[%s771 + $0x24] sm:$0xf]
        %v782 = vld [vmem:[%s771 + $0x28] sm:$0xf]
        %v783 = vld [vmem:[%s771 + $0x2c] sm:$0xf]
        %v784 = vld [vmem:[%s771 + $0x30] sm:$0xf]
        %v785 = vld [vmem:[%s771 + $0x34] sm:$0xf]
        %v786 = vld [vmem:[%s771 + $0x38] sm:$0xf]
        %v787 = vld [vmem:[%s771 + $0x3c] sm:$0xf]
        %v788 = vld [vmem:[%s2 + $0x2] sm:$0x1]
        %v789 = vlaneseq
        %v790 = vshrl.u32 %v789, 7
        %v791 = vsub.s32 0, %v790
        %v792 = vrot.slane %v788, %v791
        %v809 = vunpack.c.l.b16 %v772
        %v810 = vunpack.c.l.b16 %v773
        %v811 = vunpack.c.l.b16 %v774
        %v812 = vunpack.c.l.b16 %v775
        %v813 = vunpack.c.l.b16 %v776
        %v814 = vunpack.c.l.b16 %v777
        %v815 = vunpack.c.l.b16 %v778
        %v816 = vunpack.c.l.b16 %v779
        %v817 = vunpack.c.l.b16 %v780
        %v818 = vunpack.c.l.b16 %v781
        %v819 = vunpack.c.l.b16 %v782
        %v820 = vunpack.c.l.b16 %v783
        %v821 = vunpack.c.l.b16 %v784
        %v822 = vunpack.c.l.b16 %v785
        %v823 = vunpack.c.l.b16 %v786
        %v824 = vunpack.c.l.b16 %v787
        %v825 = vpack.c.b16 %v810, %v809
        %v826 = vpack.c.b16 %v812, %v811
        %v827 = vpack.c.b16 %v814, %v813
        %v828 = vpack.c.b16 %v816, %v815
        %v829 = vpack.c.b16 %v818, %v817
        %v830 = vpack.c.b16 %v820, %v819
        %v831 = vpack.c.b16 %v822, %v821
        %v832 = vpack.c.b16 %v824, %v823
        %841 = vmatprep.subr.bf16.mxu0 0
        %842 = vmatpush1.bf16.msra.mxu0 %v825
        %843 = vmatprep.subr.bf16.mxu0 0
        %844 = vmatpush1.bf16.msra.mxu0 %v826
        %845 = vmatprep.subr.bf16.mxu0 0
        %846 = vmatpush1.bf16.msra.mxu0 %v827
        %847 = vmatprep.subr.bf16.mxu0 0
        %848 = vmatpush1.bf16.msra.mxu0 %v828
        %849 = vmatprep.subr.bf16.mxu0 0
        %850 = vmatpush1.bf16.msra.mxu0 %v829
        %851 = vmatprep.subr.bf16.mxu0 0
        %852 = vmatpush1.bf16.msra.mxu0 %v830
        %853 = vmatprep.subr.bf16.mxu0 0
        %854 = vmatpush1.bf16.msra.mxu0 %v831
        %855 = vmatprep.subr.bf16.mxu0 0
        %856 = vmatpush1.bf16.msra.mxu0 %v832
        %857 = vmatprep.subr.bf16.mxu0 0
        %858 = vmatpush1.bf16.msra.mxu0 0
        %859 = vmatprep.subr.bf16.mxu0 0
        %860 = vmatpush1.bf16.msra.mxu0 0
        %861 = vmatprep.subr.bf16.mxu0 0
        %862 = vmatpush1.bf16.msra.mxu0 0
        %863 = vmatprep.subr.bf16.mxu0 0
        %864 = vmatpush1.bf16.msra.mxu0 0
        %865 = vmatprep.subr.bf16.mxu0 0
        %866 = vmatpush1.bf16.msra.mxu0 0
        %867 = vmatprep.subr.bf16.mxu0 0
        %868 = vmatpush1.bf16.msra.mxu0 0
        %869 = vmatprep.subr.bf16.mxu0 0
        %870 = vmatpush1.bf16.msra.mxu0 0
        %871 = vmatprep.subr.bf16.mxu0 0
        %872 = vmatpush1.bf16.msra.mxu0 0
        %873 = vmatprep.mubr.bf16.mxu0 0
        %874 = vmatmul.mubr.bf16.gmra.mrb[0].mxu0 %v755
        %v875 = vpop.f32.mrb[0].mxu0
        %v876 = vadd.f32 %v792, %v875
        %v877 = vpop.f32.mrb[0].mxu0
        %v878 = vpop.f32.mrb[0].mxu0
        %v879 = vadd.f32 %v792, %v878
        %v880 = vpop.f32.mrb[0].mxu0
        %881 = vmatprep.mubr.bf16.mxu0 0
        %882 = vmatmul.mubr.bf16.gmra.mrb[0].mxu0 %v756
        %v883 = vpop.f32.mrb[0].mxu0
        %v884 = vadd.f32 %v792, %v883
        %v885 = vpop.f32.mrb[0].mxu0
        %v886 = vpop.f32.mrb[0].mxu0
        %v887 = vadd.f32 %v792, %v886
        %v888 = vpop.f32.mrb[0].mxu0
        %889 = vmatprep.mubr.bf16.mxu0 0
        %890 = vmatmul.mubr.bf16.gmra.mrb[0].mxu0 %v757
        %v891 = vpop.f32.mrb[0].mxu0
        %v892 = vadd.f32 %v792, %v891
        %v893 = vpop.f32.mrb[0].mxu0
        %v894 = vpop.f32.mrb[0].mxu0
        %v895 = vadd.f32 %v792, %v894
        %v896 = vpop.f32.mrb[0].mxu0
        %897 = vmatprep.mubr.bf16.mxu0 0
        %898 = vmatmul.mubr.bf16.gmra.mrb[0].mxu0 %v758
        %v899 = vpop.f32.mrb[0].mxu0
        %v900 = vadd.f32 %v792, %v899
        %v901 = vpop.f32.mrb[0].mxu0
        %v902 = vpop.f32.mrb[0].mxu0
        %v903 = vadd.f32 %v792, %v902
        %v904 = vpop.f32.mrb[0].mxu0
        %905 = vmatprep.mubr.bf16.mxu0 0
        %906 = vmatmul.mubr.bf16.gmra.mrb[0].mxu0 %v759
        %v907 = vpop.f32.mrb[0].mxu0
        %v908 = vadd.f32 %v792, %v907
        %v909 = vpop.f32.mrb[0].mxu0
        %v910 = vpop.f32.mrb[0].mxu0
        %v911 = vadd.f32 %v792, %v910
        %v912 = vpop.f32.mrb[0].mxu0
        %913 = vmatprep.mubr.bf16.mxu0 0
        %914 = vmatmul.mubr.bf16.gmra.mrb[0].mxu0 %v760
        %v915 = vpop.f32.mrb[0].mxu0
        %v916 = vadd.f32 %v792, %v915
        %v917 = vpop.f32.mrb[0].mxu0
        %v918 = vpop.f32.mrb[0].mxu0
        %v919 = vadd.f32 %v792, %v918
        %v920 = vpop.f32.mrb[0].mxu0
        %921 = vmatprep.mubr.bf16.mxu0 0
        %922 = vmatmul.mubr.bf16.gmra.mrb[0].mxu0 %v761
        %v923 = vpop.f32.mrb[0].mxu0
        %v924 = vadd.f32 %v792, %v923
        %v925 = vpop.f32.mrb[0].mxu0
        %v926 = vpop.f32.mrb[0].mxu0
        %v927 = vadd.f32 %v792, %v926
        %v928 = vpop.f32.mrb[0].mxu0
        %929 = vmatprep.mubr.bf16.mxu0 0
        %930 = vmatmul.mubr.bf16.gmra.mrb[0].mxu0 %v762
        %v931 = vpop.f32.mrb[0].mxu0
        %v932 = vadd.f32 %v792, %v931
        %v933 = vpop.f32.mrb[0].mxu0
        %v934 = vpop.f32.mrb[0].mxu0
        %v935 = vadd.f32 %v792, %v934
        %v936 = vpop.f32.mrb[0].mxu0
        %937 = vmatprep.mubr.bf16.mxu0 0
        %938 = vmatmul.mubr.bf16.gmra.mrb[0].mxu0 %v763
        %v939 = vpop.f32.mrb[0].mxu0
        %v940 = vadd.f32 %v792, %v939
        %v941 = vpop.f32.mrb[0].mxu0
        %v942 = vpop.f32.mrb[0].mxu0
        %v943 = vadd.f32 %v792, %v942
        %v944 = vpop.f32.mrb[0].mxu0
        %945 = vmatprep.mubr.bf16.mxu0 0
        %946 = vmatmul.mubr.bf16.gmra.mrb[0].mxu0 %v764
        %v947 = vpop.f32.mrb[0].mxu0
        %v948 = vadd.f32 %v792, %v947
        %v949 = vpop.f32.mrb[0].mxu0
        %v950 = vpop.f32.mrb[0].mxu0
        %v951 = vadd.f32 %v792, %v950
        %v952 = vpop.f32.mrb[0].mxu0
        %953 = vmatprep.mubr.bf16.mxu0 0
        %954 = vmatmul.mubr.bf16.gmra.mrb[0].mxu0 %v765
        %v955 = vpop.f32.mrb[0].mxu0
        %v956 = vadd.f32 %v792, %v955
        %v957 = vpop.f32.mrb[0].mxu0
        %v958 = vpop.f32.mrb[0].mxu0
        %v959 = vadd.f32 %v792, %v958
        %v960 = vpop.f32.mrb[0].mxu0
        %961 = vmatprep.mubr.bf16.mxu0 0
        %962 = vmatmul.mubr.bf16.gmra.mrb[0].mxu0 %v766
        %v963 = vpop.f32.mrb[0].mxu0
        %v964 = vadd.f32 %v792, %v963
        %v965 = vpop.f32.mrb[0].mxu0
        %v966 = vpop.f32.mrb[0].mxu0
        %v967 = vadd.f32 %v792, %v966
        %v968 = vpop.f32.mrb[0].mxu0
        %969 = vmatprep.mubr.bf16.mxu0 0
        %970 = vmatmul.mubr.bf16.gmra.mrb[0].mxu0 %v767
        %v971 = vpop.f32.mrb[0].mxu0
        %v972 = vadd.f32 %v792, %v971
        %v973 = vpop.f32.mrb[0].mxu0
        %v974 = vpop.f32.mrb[0].mxu0
        %v975 = vadd.f32 %v792, %v974
        %v976 = vpop.f32.mrb[0].mxu0
        %977 = vmatprep.mubr.bf16.mxu0 0
        %978 = vmatmul.mubr.bf16.gmra.mrb[0].mxu0 %v768
        %v979 = vpop.f32.mrb[0].mxu0
        %v980 = vadd.f32 %v792, %v979
        %v981 = vpop.f32.mrb[0].mxu0
        %v982 = vpop.f32.mrb[0].mxu0
        %v983 = vadd.f32 %v792, %v982
        %v984 = vpop.f32.mrb[0].mxu0
        %985 = vmatprep.mubr.bf16.mxu0 0
        %986 = vmatmul.mubr.bf16.gmra.mrb[0].mxu0 %v769
        %v987 = vpop.f32.mrb[0].mxu0
        %v988 = vadd.f32 %v792, %v987
        %v989 = vpop.f32.mrb[0].mxu0
        %v990 = vpop.f32.mrb[0].mxu0
        %v991 = vadd.f32 %v792, %v990
        %v992 = vpop.f32.mrb[0].mxu0
        %993 = vmatprep.mubr.bf16.mxu0 0
        %994 = vmatmul.mubr.bf16.gmra.mrb[0].mxu0 %v770
        %v995 = vpop.f32.mrb[0].mxu0
        %v996 = vadd.f32 %v792, %v995
        %v997 = vpop.f32.mrb[0].mxu0
        %v998 = vpop.f32.mrb[0].mxu0
        %v999 = vadd.f32 %v792, %v998
        %v1000 = vpop.f32.mrb[0].mxu0
        %1001 = vdwg.mxu0
        %v1002 = vmax.f32 %v876, 0.0
        %v1003 = vmax.f32 %v879, 0.0
        %v1004 = vmax.f32 %v884, 0.0
        %v1005 = vmax.f32 %v887, 0.0
        %v1006 = vmax.f32 %v892, 0.0
        %v1007 = vmax.f32 %v895, 0.0
        %v1008 = vmax.f32 %v900, 0.0
        %v1009 = vmax.f32 %v903, 0.0
        %v1010 = vmax.f32 %v908, 0.0
        %v1011 = vmax.f32 %v911, 0.0
        %v1012 = vmax.f32 %v916, 0.0
        %v1013 = vmax.f32 %v919, 0.0
        %v1014 = vmax.f32 %v924, 0.0
        %v1015 = vmax.f32 %v927, 0.0
        %v1016 = vmax.f32 %v932, 0.0
        %v1017 = vmax.f32 %v935, 0.0
        %v1018 = vmax.f32 %v940, 0.0
        %v1019 = vmax.f32 %v943, 0.0
        %v1020 = vmax.f32 %v948, 0.0
        %v1021 = vmax.f32 %v951, 0.0
        %v1022 = vmax.f32 %v956, 0.0
        %v1023 = vmax.f32 %v959, 0.0
        %v1024 = vmax.f32 %v964, 0.0
        %v1025 = vmax.f32 %v967, 0.0
        %v1026 = vmax.f32 %v972, 0.0
        %v1027 = vmax.f32 %v975, 0.0
        %v1028 = vmax.f32 %v980, 0.0
        %v1029 = vmax.f32 %v983, 0.0
        %v1030 = vmax.f32 %v988, 0.0
        %v1031 = vmax.f32 %v991, 0.0
        %v1032 = vmax.f32 %v996, 0.0
        %v1033 = vmax.f32 %v999, 0.0
        %v1034 = vpack.c.bf16 %v1003, %v1002
        %v1035 = vpack.c.bf16 %v1005, %v1004
        %v1036 = vpack.c.bf16 %v1007, %v1006
        %v1037 = vpack.c.bf16 %v1009, %v1008
        %v1038 = vpack.c.bf16 %v1011, %v1010
        %v1039 = vpack.c.bf16 %v1013, %v1012
        %v1040 = vpack.c.bf16 %v1015, %v1014
        %v1041 = vpack.c.bf16 %v1017, %v1016
        %v1042 = vpack.c.bf16 %v1019, %v1018
        %v1043 = vpack.c.bf16 %v1021, %v1020
        %v1044 = vpack.c.bf16 %v1023, %v1022
        %v1045 = vpack.c.bf16 %v1025, %v1024
        %v1046 = vpack.c.bf16 %v1027, %v1026
        %v1047 = vpack.c.bf16 %v1029, %v1028
        %v1048 = vpack.c.bf16 %v1031, %v1030
        %v1049 = vpack.c.bf16 %v1033, %v1032
        %s1050 = scalar_lea.vmem %s1, 192
        %v1051 = vld [vmem:[%s1050] sm:$0xf]
        %v1052 = vld [vmem:[%s1050 + $0x4] sm:$0xf]
        %v1053 = vld [vmem:[%s1050 + $0x8] sm:$0xf]
        %v1054 = vld [vmem:[%s1050 + $0xc] sm:$0xf]
        %v1055 = vld [vmem:[%s1050 + $0x10] sm:$0xf]
        %v1056 = vld [vmem:[%s1050 + $0x14] sm:$0xf]
        %v1057 = vld [vmem:[%s1050 + $0x18] sm:$0xf]
        %v1058 = vld [vmem:[%s1050 + $0x1c] sm:$0xf]
        %v1059 = vld [vmem:[%s1050 + $0x20] sm:$0xf]
        %v1060 = vld [vmem:[%s1050 + $0x24] sm:$0xf]
        %v1061 = vld [vmem:[%s1050 + $0x28] sm:$0xf]
        %v1062 = vld [vmem:[%s1050 + $0x2c] sm:$0xf]
        %v1063 = vld [vmem:[%s1050 + $0x30] sm:$0xf]
        %v1064 = vld [vmem:[%s1050 + $0x34] sm:$0xf]
        %v1065 = vld [vmem:[%s1050 + $0x38] sm:$0xf]
        %v1066 = vld [vmem:[%s1050 + $0x3c] sm:$0xf]
        %v1067 = vld [vmem:[%s2 + $0x3] sm:$0x1]
        %v1068 = vlaneseq
        %v1069 = vshrl.u32 %v1068, 7
        %v1070 = vsub.s32 0, %v1069
        %v1071 = vrot.slane %v1067, %v1070
        %v1088 = vunpack.c.l.b16 %v1051
        %v1089 = vunpack.c.l.b16 %v1052
        %v1090 = vunpack.c.l.b16 %v1053
        %v1091 = vunpack.c.l.b16 %v1054
        %v1092 = vunpack.c.l.b16 %v1055
        %v1093 = vunpack.c.l.b16 %v1056
        %v1094 = vunpack.c.l.b16 %v1057
        %v1095 = vunpack.c.l.b16 %v1058
        %v1096 = vunpack.c.l.b16 %v1059
        %v1097 = vunpack.c.l.b16 %v1060
        %v1098 = vunpack.c.l.b16 %v1061
        %v1099 = vunpack.c.l.b16 %v1062
        %v1100 = vunpack.c.l.b16 %v1063
        %v1101 = vunpack.c.l.b16 %v1064
        %v1102 = vunpack.c.l.b16 %v1065
        %v1103 = vunpack.c.l.b16 %v1066
        %v1104 = vpack.c.b16 %v1089, %v1088
        %v1105 = vpack.c.b16 %v1091, %v1090
        %v1106 = vpack.c.b16 %v1093, %v1092
        %v1107 = vpack.c.b16 %v1095, %v1094
        %v1108 = vpack.c.b16 %v1097, %v1096
        %v1109 = vpack.c.b16 %v1099, %v1098
        %v1110 = vpack.c.b16 %v1101, %v1100
        %v1111 = vpack.c.b16 %v1103, %v1102
        %1120 = vmatprep.subr.bf16.mxu0 0
        %1121 = vmatpush1.bf16.msra.mxu0 %v1104
        %1122 = vmatprep.subr.bf16.mxu0 0
        %1123 = vmatpush1.bf16.msra.mxu0 %v1105
        %1124 = vmatprep.subr.bf16.mxu0 0
        %1125 = vmatpush1.bf16.msra.mxu0 %v1106
        %1126 = vmatprep.subr.bf16.mxu0 0
        %1127 = vmatpush1.bf16.msra.mxu0 %v1107
        %1128 = vmatprep.subr.bf16.mxu0 0
        %1129 = vmatpush1.bf16.msra.mxu0 %v1108
        %1130 = vmatprep.subr.bf16.mxu0 0
        %1131 = vmatpush1.bf16.msra.mxu0 %v1109
        %1132 = vmatprep.subr.bf16.mxu0 0
        %1133 = vmatpush1.bf16.msra.mxu0 %v1110
        %1134 = vmatprep.subr.bf16.mxu0 0
        %1135 = vmatpush1.bf16.msra.mxu0 %v1111
        %1136 = vmatprep.subr.bf16.mxu0 0
        %1137 = vmatpush1.bf16.msra.mxu0 0
        %1138 = vmatprep.subr.bf16.mxu0 0
        %1139 = vmatpush1.bf16.msra.mxu0 0
        %1140 = vmatprep.subr.bf16.mxu0 0
        %1141 = vmatpush1.bf16.msra.mxu0 0
        %1142 = vmatprep.subr.bf16.mxu0 0
        %1143 = vmatpush1.bf16.msra.mxu0 0
        %1144 = vmatprep.subr.bf16.mxu0 0
        %1145 = vmatpush1.bf16.msra.mxu0 0
        %1146 = vmatprep.subr.bf16.mxu0 0
        %1147 = vmatpush1.bf16.msra.mxu0 0
        %1148 = vmatprep.subr.bf16.mxu0 0
        %1149 = vmatpush1.bf16.msra.mxu0 0
        %1150 = vmatprep.subr.bf16.mxu0 0
        %1151 = vmatpush1.bf16.msra.mxu0 0
        %1152 = vmatprep.mubr.bf16.mxu0 0
        %1153 = vmatmul.mubr.bf16.gmra.mrb[0].mxu0 %v1034
        %v1154 = vpop.f32.mrb[0].mxu0
        %v1155 = vadd.f32 %v1071, %v1154
        %v1156 = vpop.f32.mrb[0].mxu0
        %v1157 = vpop.f32.mrb[0].mxu0
        %v1158 = vadd.f32 %v1071, %v1157
        %v1159 = vpop.f32.mrb[0].mxu0
        %1160 = vmatprep.mubr.bf16.mxu0 0
        %1161 = vmatmul.mubr.bf16.gmra.mrb[0].mxu0 %v1035
        %v1162 = vpop.f32.mrb[0].mxu0
        %v1163 = vadd.f32 %v1071, %v1162
        %v1164 = vpop.f32.mrb[0].mxu0
        %v1165 = vpop.f32.mrb[0].mxu0
        %v1166 = vadd.f32 %v1071, %v1165
        %v1167 = vpop.f32.mrb[0].mxu0
        %1168 = vmatprep.mubr.bf16.mxu0 0
        %1169 = vmatmul.mubr.bf16.gmra.mrb[0].mxu0 %v1036
        %v1170 = vpop.f32.mrb[0].mxu0
        %v1171 = vadd.f32 %v1071, %v1170
        %v1172 = vpop.f32.mrb[0].mxu0
        %v1173 = vpop.f32.mrb[0].mxu0
        %v1174 = vadd.f32 %v1071, %v1173
        %v1175 = vpop.f32.mrb[0].mxu0
        %1176 = vmatprep.mubr.bf16.mxu0 0
        %1177 = vmatmul.mubr.bf16.gmra.mrb[0].mxu0 %v1037
        %v1178 = vpop.f32.mrb[0].mxu0
        %v1179 = vadd.f32 %v1071, %v1178
        %v1180 = vpop.f32.mrb[0].mxu0
        %v1181 = vpop.f32.mrb[0].mxu0
        %v1182 = vadd.f32 %v1071, %v1181
        %v1183 = vpop.f32.mrb[0].mxu0
        %1184 = vmatprep.mubr.bf16.mxu0 0
        %1185 = vmatmul.mubr.bf16.gmra.mrb[0].mxu0 %v1038
        %v1186 = vpop.f32.mrb[0].mxu0
        %v1187 = vadd.f32 %v1071, %v1186
        %v1188 = vpop.f32.mrb[0].mxu0
        %v1189 = vpop.f32.mrb[0].mxu0
        %v1190 = vadd.f32 %v1071, %v1189
        %v1191 = vpop.f32.mrb[0].mxu0
        %1192 = vmatprep.mubr.bf16.mxu0 0
        %1193 = vmatmul.mubr.bf16.gmra.mrb[0].mxu0 %v1039
        %v1194 = vpop.f32.mrb[0].mxu0
        %v1195 = vadd.f32 %v1071, %v1194
        %v1196 = vpop.f32.mrb[0].mxu0
        %v1197 = vpop.f32.mrb[0].mxu0
        %v1198 = vadd.f32 %v1071, %v1197
        %v1199 = vpop.f32.mrb[0].mxu0
        %1200 = vmatprep.mubr.bf16.mxu0 0
        %1201 = vmatmul.mubr.bf16.gmra.mrb[0].mxu0 %v1040
        %v1202 = vpop.f32.mrb[0].mxu0
        %v1203 = vadd.f32 %v1071, %v1202
        %v1204 = vpop.f32.mrb[0].mxu0
        %v1205 = vpop.f32.mrb[0].mxu0
        %v1206 = vadd.f32 %v1071, %v1205
        %v1207 = vpop.f32.mrb[0].mxu0
        %1208 = vmatprep.mubr.bf16.mxu0 0
        %1209 = vmatmul.mubr.bf16.gmra.mrb[0].mxu0 %v1041
        %v1210 = vpop.f32.mrb[0].mxu0
        %v1211 = vadd.f32 %v1071, %v1210
        %v1212 = vpop.f32.mrb[0].mxu0
        %v1213 = vpop.f32.mrb[0].mxu0
        %v1214 = vadd.f32 %v1071, %v1213
        %v1215 = vpop.f32.mrb[0].mxu0
        %1216 = vmatprep.mubr.bf16.mxu0 0
        %1217 = vmatmul.mubr.bf16.gmra.mrb[0].mxu0 %v1042
        %v1218 = vpop.f32.mrb[0].mxu0
        %v1219 = vadd.f32 %v1071, %v1218
        %v1220 = vpop.f32.mrb[0].mxu0
        %v1221 = vpop.f32.mrb[0].mxu0
        %v1222 = vadd.f32 %v1071, %v1221
        %v1223 = vpop.f32.mrb[0].mxu0
        %1224 = vmatprep.mubr.bf16.mxu0 0
        %1225 = vmatmul.mubr.bf16.gmra.mrb[0].mxu0 %v1043
        %v1226 = vpop.f32.mrb[0].mxu0
        %v1227 = vadd.f32 %v1071, %v1226
        %v1228 = vpop.f32.mrb[0].mxu0
        %v1229 = vpop.f32.mrb[0].mxu0
        %v1230 = vadd.f32 %v1071, %v1229
        %v1231 = vpop.f32.mrb[0].mxu0
        %1232 = vmatprep.mubr.bf16.mxu0 0
        %1233 = vmatmul.mubr.bf16.gmra.mrb[0].mxu0 %v1044
        %v1234 = vpop.f32.mrb[0].mxu0
        %v1235 = vadd.f32 %v1071, %v1234
        %v1236 = vpop.f32.mrb[0].mxu0
        %v1237 = vpop.f32.mrb[0].mxu0
        %v1238 = vadd.f32 %v1071, %v1237
        %v1239 = vpop.f32.mrb[0].mxu0
        %1240 = vmatprep.mubr.bf16.mxu0 0
        %1241 = vmatmul.mubr.bf16.gmra.mrb[0].mxu0 %v1045
        %v1242 = vpop.f32.mrb[0].mxu0
        %v1243 = vadd.f32 %v1071, %v1242
        %v1244 = vpop.f32.mrb[0].mxu0
        %v1245 = vpop.f32.mrb[0].mxu0
        %v1246 = vadd.f32 %v1071, %v1245
        %v1247 = vpop.f32.mrb[0].mxu0
        %1248 = vmatprep.mubr.bf16.mxu0 0
        %1249 = vmatmul.mubr.bf16.gmra.mrb[0].mxu0 %v1046
        %v1250 = vpop.f32.mrb[0].mxu0
        %v1251 = vadd.f32 %v1071, %v1250
        %v1252 = vpop.f32.mrb[0].mxu0
        %v1253 = vpop.f32.mrb[0].mxu0
        %v1254 = vadd.f32 %v1071, %v1253
        %v1255 = vpop.f32.mrb[0].mxu0
        %1256 = vmatprep.mubr.bf16.mxu0 0
        %1257 = vmatmul.mubr.bf16.gmra.mrb[0].mxu0 %v1047
        %v1258 = vpop.f32.mrb[0].mxu0
        %v1259 = vadd.f32 %v1071, %v1258
        %v1260 = vpop.f32.mrb[0].mxu0
        %v1261 = vpop.f32.mrb[0].mxu0
        %v1262 = vadd.f32 %v1071, %v1261
        %v1263 = vpop.f32.mrb[0].mxu0
        %1264 = vmatprep.mubr.bf16.mxu0 0
        %1265 = vmatmul.mubr.bf16.gmra.mrb[0].mxu0 %v1048
        %v1266 = vpop.f32.mrb[0].mxu0
        %v1267 = vadd.f32 %v1071, %v1266
        %v1268 = vpop.f32.mrb[0].mxu0
        %v1269 = vpop.f32.mrb[0].mxu0
        %v1270 = vadd.f32 %v1071, %v1269
        %v1271 = vpop.f32.mrb[0].mxu0
        %1272 = vmatprep.mubr.bf16.mxu0 0
        %1273 = vmatmul.mubr.bf16.gmra.mrb[0].mxu0 %v1049
        %v1274 = vpop.f32.mrb[0].mxu0
        %v1275 = vadd.f32 %v1071, %v1274
        %v1276 = vpop.f32.mrb[0].mxu0
        %v1277 = vpop.f32.mrb[0].mxu0
        %v1278 = vadd.f32 %v1071, %v1277
        %v1279 = vpop.f32.mrb[0].mxu0
        %1280 = vdwg.mxu0
        %v1281 = vmax.f32 %v1155, 0.0
        %v1282 = vmax.f32 %v1158, 0.0
        %v1283 = vmax.f32 %v1163, 0.0
        %v1284 = vmax.f32 %v1166, 0.0
        %v1285 = vmax.f32 %v1171, 0.0
        %v1286 = vmax.f32 %v1174, 0.0
        %v1287 = vmax.f32 %v1179, 0.0
        %v1288 = vmax.f32 %v1182, 0.0
        %v1289 = vmax.f32 %v1187, 0.0
        %v1290 = vmax.f32 %v1190, 0.0
        %v1291 = vmax.f32 %v1195, 0.0
        %v1292 = vmax.f32 %v1198, 0.0
        %v1293 = vmax.f32 %v1203, 0.0
        %v1294 = vmax.f32 %v1206, 0.0
        %v1295 = vmax.f32 %v1211, 0.0
        %v1296 = vmax.f32 %v1214, 0.0
        %v1297 = vmax.f32 %v1219, 0.0
        %v1298 = vmax.f32 %v1222, 0.0
        %v1299 = vmax.f32 %v1227, 0.0
        %v1300 = vmax.f32 %v1230, 0.0
        %v1301 = vmax.f32 %v1235, 0.0
        %v1302 = vmax.f32 %v1238, 0.0
        %v1303 = vmax.f32 %v1243, 0.0
        %v1304 = vmax.f32 %v1246, 0.0
        %v1305 = vmax.f32 %v1251, 0.0
        %v1306 = vmax.f32 %v1254, 0.0
        %v1307 = vmax.f32 %v1259, 0.0
        %v1308 = vmax.f32 %v1262, 0.0
        %v1309 = vmax.f32 %v1267, 0.0
        %v1310 = vmax.f32 %v1270, 0.0
        %v1311 = vmax.f32 %v1275, 0.0
        %v1312 = vmax.f32 %v1278, 0.0
        %v1313 = vpack.c.bf16 %v1282, %v1281
        %v1314 = vpack.c.bf16 %v1284, %v1283
        %v1315 = vpack.c.bf16 %v1286, %v1285
        %v1316 = vpack.c.bf16 %v1288, %v1287
        %v1317 = vpack.c.bf16 %v1290, %v1289
        %v1318 = vpack.c.bf16 %v1292, %v1291
        %v1319 = vpack.c.bf16 %v1294, %v1293
        %v1320 = vpack.c.bf16 %v1296, %v1295
        %v1321 = vpack.c.bf16 %v1298, %v1297
        %v1322 = vpack.c.bf16 %v1300, %v1299
        %v1323 = vpack.c.bf16 %v1302, %v1301
        %v1324 = vpack.c.bf16 %v1304, %v1303
        %v1325 = vpack.c.bf16 %v1306, %v1305
        %v1326 = vpack.c.bf16 %v1308, %v1307
        %v1327 = vpack.c.bf16 %v1310, %v1309
        %v1328 = vpack.c.bf16 %v1312, %v1311
        %s1329 = scalar_lea.vmem %s1, 256
        %v1330 = vld [vmem:[%s1329] sm:$0xf]
        %v1331 = vld [vmem:[%s1329 + $0x4] sm:$0xf]
        %v1332 = vld [vmem:[%s1329 + $0x8] sm:$0xf]
        %v1333 = vld [vmem:[%s1329 + $0xc] sm:$0xf]
        %v1334 = vld [vmem:[%s1329 + $0x10] sm:$0xf]
        %v1335 = vld [vmem:[%s1329 + $0x14] sm:$0xf]
        %v1336 = vld [vmem:[%s1329 + $0x18] sm:$0xf]
        %v1337 = vld [vmem:[%s1329 + $0x1c] sm:$0xf]
        %v1338 = vld [vmem:[%s1329 + $0x20] sm:$0xf]
        %v1339 = vld [vmem:[%s1329 + $0x24] sm:$0xf]
        %v1340 = vld [vmem:[%s1329 + $0x28] sm:$0xf]
        %v1341 = vld [vmem:[%s1329 + $0x2c] sm:$0xf]
        %v1342 = vld [vmem:[%s1329 + $0x30] sm:$0xf]
        %v1343 = vld [vmem:[%s1329 + $0x34] sm:$0xf]
        %v1344 = vld [vmem:[%s1329 + $0x38] sm:$0xf]
        %v1345 = vld [vmem:[%s1329 + $0x3c] sm:$0xf]
        %v1346 = vld [vmem:[%s2 + $0x4] sm:$0x1]
        %v1347 = vlaneseq
        %v1348 = vshrl.u32 %v1347, 7
        %v1349 = vsub.s32 0, %v1348
        %v1350 = vrot.slane %v1346, %v1349
        %v1367 = vunpack.c.l.b16 %v1330
        %v1368 = vunpack.c.l.b16 %v1331
        %v1369 = vunpack.c.l.b16 %v1332
        %v1370 = vunpack.c.l.b16 %v1333
        %v1371 = vunpack.c.l.b16 %v1334
        %v1372 = vunpack.c.l.b16 %v1335
        %v1373 = vunpack.c.l.b16 %v1336
        %v1374 = vunpack.c.l.b16 %v1337
        %v1375 = vunpack.c.l.b16 %v1338
        %v1376 = vunpack.c.l.b16 %v1339
        %v1377 = vunpack.c.l.b16 %v1340
        %v1378 = vunpack.c.l.b16 %v1341
        %v1379 = vunpack.c.l.b16 %v1342
        %v1380 = vunpack.c.l.b16 %v1343
        %v1381 = vunpack.c.l.b16 %v1344
        %v1382 = vunpack.c.l.b16 %v1345
        %v1383 = vpack.c.b16 %v1368, %v1367
        %v1384 = vpack.c.b16 %v1370, %v1369
        %v1385 = vpack.c.b16 %v1372, %v1371
        %v1386 = vpack.c.b16 %v1374, %v1373
        %v1387 = vpack.c.b16 %v1376, %v1375
        %v1388 = vpack.c.b16 %v1378, %v1377
        %v1389 = vpack.c.b16 %v1380, %v1379
        %v1390 = vpack.c.b16 %v1382, %v1381
        %1399 = vmatprep.subr.bf16.mxu0 0
        %1400 = vmatpush1.bf16.msra.mxu0 %v1383
        %1401 = vmatprep.subr.bf16.mxu0 0
        %1402 = vmatpush1.bf16.msra.mxu0 %v1384
        %1403 = vmatprep.subr.bf16.mxu0 0
        %1404 = vmatpush1.bf16.msra.mxu0 %v1385
        %1405 = vmatprep.subr.bf16.mxu0 0
        %1406 = vmatpush1.bf16.msra.mxu0 %v1386
        %1407 = vmatprep.subr.bf16.mxu0 0
        %1408 = vmatpush1.bf16.msra.mxu0 %v1387
        %1409 = vmatprep.subr.bf16.mxu0 0
        %1410 = vmatpush1.bf16.msra.mxu0 %v1388
        %1411 = vmatprep.subr.bf16.mxu0 0
        %1412 = vmatpush1.bf16.msra.mxu0 %v1389
        %1413 = vmatprep.subr.bf16.mxu0 0
        %1414 = vmatpush1.bf16.msra.mxu0 %v1390
        %1415 = vmatprep.subr.bf16.mxu0 0
        %1416 = vmatpush1.bf16.msra.mxu0 0
        %1417 = vmatprep.subr.bf16.mxu0 0
        %1418 = vmatpush1.bf16.msra.mxu0 0
        %1419 = vmatprep.subr.bf16.mxu0 0
        %1420 = vmatpush1.bf16.msra.mxu0 0
        %1421 = vmatprep.subr.bf16.mxu0 0
        %1422 = vmatpush1.bf16.msra.mxu0 0
        %1423 = vmatprep.subr.bf16.mxu0 0
        %1424 = vmatpush1.bf16.msra.mxu0 0
        %1425 = vmatprep.subr.bf16.mxu0 0
        %1426 = vmatpush1.bf16.msra.mxu0 0
        %1427 = vmatprep.subr.bf16.mxu0 0
        %1428 = vmatpush1.bf16.msra.mxu0 0
        %1429 = vmatprep.subr.bf16.mxu0 0
        %1430 = vmatpush1.bf16.msra.mxu0 0
        %1431 = vmatprep.mubr.bf16.mxu0 0
        %1432 = vmatmul.mubr.bf16.gmra.mrb[0].mxu0 %v1313
        %v1433 = vpop.f32.mrb[0].mxu0
        %v1434 = vadd.f32 %v1350, %v1433
        %v1435 = vpop.f32.mrb[0].mxu0
        %v1436 = vpop.f32.mrb[0].mxu0
        %v1437 = vadd.f32 %v1350, %v1436
        %v1438 = vpop.f32.mrb[0].mxu0
        %1439 = vmatprep.mubr.bf16.mxu0 0
        %1440 = vmatmul.mubr.bf16.gmra.mrb[0].mxu0 %v1314
        %v1441 = vpop.f32.mrb[0].mxu0
        %v1442 = vadd.f32 %v1350, %v1441
        %v1443 = vpop.f32.mrb[0].mxu0
        %v1444 = vpop.f32.mrb[0].mxu0
        %v1445 = vadd.f32 %v1350, %v1444
        %v1446 = vpop.f32.mrb[0].mxu0
        %1447 = vmatprep.mubr.bf16.mxu0 0
        %1448 = vmatmul.mubr.bf16.gmra.mrb[0].mxu0 %v1315
        %v1449 = vpop.f32.mrb[0].mxu0
        %v1450 = vadd.f32 %v1350, %v1449
        %v1451 = vpop.f32.mrb[0].mxu0
        %v1452 = vpop.f32.mrb[0].mxu0
        %v1453 = vadd.f32 %v1350, %v1452
        %v1454 = vpop.f32.mrb[0].mxu0
        %1455 = vmatprep.mubr.bf16.mxu0 0
        %1456 = vmatmul.mubr.bf16.gmra.mrb[0].mxu0 %v1316
        %v1457 = vpop.f32.mrb[0].mxu0
        %v1458 = vadd.f32 %v1350, %v1457
        %v1459 = vpop.f32.mrb[0].mxu0
        %v1460 = vpop.f32.mrb[0].mxu0
        %v1461 = vadd.f32 %v1350, %v1460
        %v1462 = vpop.f32.mrb[0].mxu0
        %1463 = vmatprep.mubr.bf16.mxu0 0
        %1464 = vmatmul.mubr.bf16.gmra.mrb[0].mxu0 %v1317
        %v1465 = vpop.f32.mrb[0].mxu0
        %v1466 = vadd.f32 %v1350, %v1465
        %v1467 = vpop.f32.mrb[0].mxu0
        %v1468 = vpop.f32.mrb[0].mxu0
        %v1469 = vadd.f32 %v1350, %v1468
        %v1470 = vpop.f32.mrb[0].mxu0
        %1471 = vmatprep.mubr.bf16.mxu0 0
        %1472 = vmatmul.mubr.bf16.gmra.mrb[0].mxu0 %v1318
        %v1473 = vpop.f32.mrb[0].mxu0
        %v1474 = vadd.f32 %v1350, %v1473
        %v1475 = vpop.f32.mrb[0].mxu0
        %v1476 = vpop.f32.mrb[0].mxu0
        %v1477 = vadd.f32 %v1350, %v1476
        %v1478 = vpop.f32.mrb[0].mxu0
        %1479 = vmatprep.mubr.bf16.mxu0 0
        %1480 = vmatmul.mubr.bf16.gmra.mrb[0].mxu0 %v1319
        %v1481 = vpop.f32.mrb[0].mxu0
        %v1482 = vadd.f32 %v1350, %v1481
        %v1483 = vpop.f32.mrb[0].mxu0
        %v1484 = vpop.f32.mrb[0].mxu0
        %v1485 = vadd.f32 %v1350, %v1484
        %v1486 = vpop.f32.mrb[0].mxu0
        %1487 = vmatprep.mubr.bf16.mxu0 0
        %1488 = vmatmul.mubr.bf16.gmra.mrb[0].mxu0 %v1320
        %v1489 = vpop.f32.mrb[0].mxu0
        %v1490 = vadd.f32 %v1350, %v1489
        %v1491 = vpop.f32.mrb[0].mxu0
        %v1492 = vpop.f32.mrb[0].mxu0
        %v1493 = vadd.f32 %v1350, %v1492
        %v1494 = vpop.f32.mrb[0].mxu0
        %1495 = vmatprep.mubr.bf16.mxu0 0
        %1496 = vmatmul.mubr.bf16.gmra.mrb[0].mxu0 %v1321
        %v1497 = vpop.f32.mrb[0].mxu0
        %v1498 = vadd.f32 %v1350, %v1497
        %v1499 = vpop.f32.mrb[0].mxu0
        %v1500 = vpop.f32.mrb[0].mxu0
        %v1501 = vadd.f32 %v1350, %v1500
        %v1502 = vpop.f32.mrb[0].mxu0
        %1503 = vmatprep.mubr.bf16.mxu0 0
        %1504 = vmatmul.mubr.bf16.gmra.mrb[0].mxu0 %v1322
        %v1505 = vpop.f32.mrb[0].mxu0
        %v1506 = vadd.f32 %v1350, %v1505
        %v1507 = vpop.f32.mrb[0].mxu0
        %v1508 = vpop.f32.mrb[0].mxu0
        %v1509 = vadd.f32 %v1350, %v1508
        %v1510 = vpop.f32.mrb[0].mxu0
        %1511 = vmatprep.mubr.bf16.mxu0 0
        %1512 = vmatmul.mubr.bf16.gmra.mrb[0].mxu0 %v1323
        %v1513 = vpop.f32.mrb[0].mxu0
        %v1514 = vadd.f32 %v1350, %v1513
        %v1515 = vpop.f32.mrb[0].mxu0
        %v1516 = vpop.f32.mrb[0].mxu0
        %v1517 = vadd.f32 %v1350, %v1516
        %v1518 = vpop.f32.mrb[0].mxu0
        %1519 = vmatprep.mubr.bf16.mxu0 0
        %1520 = vmatmul.mubr.bf16.gmra.mrb[0].mxu0 %v1324
        %v1521 = vpop.f32.mrb[0].mxu0
        %v1522 = vadd.f32 %v1350, %v1521
        %v1523 = vpop.f32.mrb[0].mxu0
        %v1524 = vpop.f32.mrb[0].mxu0
        %v1525 = vadd.f32 %v1350, %v1524
        %v1526 = vpop.f32.mrb[0].mxu0
        %1527 = vmatprep.mubr.bf16.mxu0 0
        %1528 = vmatmul.mubr.bf16.gmra.mrb[0].mxu0 %v1325
        %v1529 = vpop.f32.mrb[0].mxu0
        %v1530 = vadd.f32 %v1350, %v1529
        %v1531 = vpop.f32.mrb[0].mxu0
        %v1532 = vpop.f32.mrb[0].mxu0
        %v1533 = vadd.f32 %v1350, %v1532
        %v1534 = vpop.f32.mrb[0].mxu0
        %1535 = vmatprep.mubr.bf16.mxu0 0
        %1536 = vmatmul.mubr.bf16.gmra.mrb[0].mxu0 %v1326
        %v1537 = vpop.f32.mrb[0].mxu0
        %v1538 = vadd.f32 %v1350, %v1537
        %v1539 = vpop.f32.mrb[0].mxu0
        %v1540 = vpop.f32.mrb[0].mxu0
        %v1541 = vadd.f32 %v1350, %v1540
        %v1542 = vpop.f32.mrb[0].mxu0
        %1543 = vmatprep.mubr.bf16.mxu0 0
        %1544 = vmatmul.mubr.bf16.gmra.mrb[0].mxu0 %v1327
        %v1545 = vpop.f32.mrb[0].mxu0
        %v1546 = vadd.f32 %v1350, %v1545
        %v1547 = vpop.f32.mrb[0].mxu0
        %v1548 = vpop.f32.mrb[0].mxu0
        %v1549 = vadd.f32 %v1350, %v1548
        %v1550 = vpop.f32.mrb[0].mxu0
        %1551 = vmatprep.mubr.bf16.mxu0 0
        %1552 = vmatmul.mubr.bf16.gmra.mrb[0].mxu0 %v1328
        %v1553 = vpop.f32.mrb[0].mxu0
        %v1554 = vadd.f32 %v1350, %v1553
        %v1555 = vpop.f32.mrb[0].mxu0
        %v1556 = vpop.f32.mrb[0].mxu0
        %v1557 = vadd.f32 %v1350, %v1556
        %v1558 = vpop.f32.mrb[0].mxu0
        %1559 = vdwg.mxu0
        %v1560 = vmax.f32 %v1434, 0.0
        %v1561 = vmax.f32 %v1437, 0.0
        %v1562 = vmax.f32 %v1442, 0.0
        %v1563 = vmax.f32 %v1445, 0.0
        %v1564 = vmax.f32 %v1450, 0.0
        %v1565 = vmax.f32 %v1453, 0.0
        %v1566 = vmax.f32 %v1458, 0.0
        %v1567 = vmax.f32 %v1461, 0.0
        %v1568 = vmax.f32 %v1466, 0.0
        %v1569 = vmax.f32 %v1469, 0.0
        %v1570 = vmax.f32 %v1474, 0.0
        %v1571 = vmax.f32 %v1477, 0.0
        %v1572 = vmax.f32 %v1482, 0.0
        %v1573 = vmax.f32 %v1485, 0.0
        %v1574 = vmax.f32 %v1490, 0.0
        %v1575 = vmax.f32 %v1493, 0.0
        %v1576 = vmax.f32 %v1498, 0.0
        %v1577 = vmax.f32 %v1501, 0.0
        %v1578 = vmax.f32 %v1506, 0.0
        %v1579 = vmax.f32 %v1509, 0.0
        %v1580 = vmax.f32 %v1514, 0.0
        %v1581 = vmax.f32 %v1517, 0.0
        %v1582 = vmax.f32 %v1522, 0.0
        %v1583 = vmax.f32 %v1525, 0.0
        %v1584 = vmax.f32 %v1530, 0.0
        %v1585 = vmax.f32 %v1533, 0.0
        %v1586 = vmax.f32 %v1538, 0.0
        %v1587 = vmax.f32 %v1541, 0.0
        %v1588 = vmax.f32 %v1546, 0.0
        %v1589 = vmax.f32 %v1549, 0.0
        %v1590 = vmax.f32 %v1554, 0.0
        %v1591 = vmax.f32 %v1557, 0.0
        %v1592 = vpack.c.bf16 %v1561, %v1560
        %v1593 = vpack.c.bf16 %v1563, %v1562
        %v1594 = vpack.c.bf16 %v1565, %v1564
        %v1595 = vpack.c.bf16 %v1567, %v1566
        %v1596 = vpack.c.bf16 %v1569, %v1568
        %v1597 = vpack.c.bf16 %v1571, %v1570
        %v1598 = vpack.c.bf16 %v1573, %v1572
        %v1599 = vpack.c.bf16 %v1575, %v1574
        %v1600 = vpack.c.bf16 %v1577, %v1576
        %v1601 = vpack.c.bf16 %v1579, %v1578
        %v1602 = vpack.c.bf16 %v1581, %v1580
        %v1603 = vpack.c.bf16 %v1583, %v1582
        %v1604 = vpack.c.bf16 %v1585, %v1584
        %v1605 = vpack.c.bf16 %v1587, %v1586
        %v1606 = vpack.c.bf16 %v1589, %v1588
        %v1607 = vpack.c.bf16 %v1591, %v1590
        %s1608 = scalar_lea.vmem %s1, 320
        %v1609 = vld [vmem:[%s1608] sm:$0xf]
        %v1610 = vld [vmem:[%s1608 + $0x4] sm:$0xf]
        %v1611 = vld [vmem:[%s1608 + $0x8] sm:$0xf]
        %v1612 = vld [vmem:[%s1608 + $0xc] sm:$0xf]
        %v1613 = vld [vmem:[%s1608 + $0x10] sm:$0xf]
        %v1614 = vld [vmem:[%s1608 + $0x14] sm:$0xf]
        %v1615 = vld [vmem:[%s1608 + $0x18] sm:$0xf]
        %v1616 = vld [vmem:[%s1608 + $0x1c] sm:$0xf]
        %v1617 = vld [vmem:[%s1608 + $0x20] sm:$0xf]
        %v1618 = vld [vmem:[%s1608 + $0x24] sm:$0xf]
        %v1619 = vld [vmem:[%s1608 + $0x28] sm:$0xf]
        %v1620 = vld [vmem:[%s1608 + $0x2c] sm:$0xf]
        %v1621 = vld [vmem:[%s1608 + $0x30] sm:$0xf]
        %v1622 = vld [vmem:[%s1608 + $0x34] sm:$0xf]
        %v1623 = vld [vmem:[%s1608 + $0x38] sm:$0xf]
        %v1624 = vld [vmem:[%s1608 + $0x3c] sm:$0xf]
        %v1625 = vld [vmem:[%s2 + $0x5] sm:$0x1]
        %v1626 = vlaneseq
        %v1627 = vshrl.u32 %v1626, 7
        %v1628 = vsub.s32 0, %v1627
        %v1629 = vrot.slane %v1625, %v1628
        %v1646 = vunpack.c.l.b16 %v1609
        %v1647 = vunpack.c.l.b16 %v1610
        %v1648 = vunpack.c.l.b16 %v1611
        %v1649 = vunpack.c.l.b16 %v1612
        %v1650 = vunpack.c.l.b16 %v1613
        %v1651 = vunpack.c.l.b16 %v1614
        %v1652 = vunpack.c.l.b16 %v1615
        %v1653 = vunpack.c.l.b16 %v1616
        %v1654 = vunpack.c.l.b16 %v1617
        %v1655 = vunpack.c.l.b16 %v1618
        %v1656 = vunpack.c.l.b16 %v1619
        %v1657 = vunpack.c.l.b16 %v1620
        %v1658 = vunpack.c.l.b16 %v1621
        %v1659 = vunpack.c.l.b16 %v1622
        %v1660 = vunpack.c.l.b16 %v1623
        %v1661 = vunpack.c.l.b16 %v1624
        %v1662 = vpack.c.b16 %v1647, %v1646
        %v1663 = vpack.c.b16 %v1649, %v1648
        %v1664 = vpack.c.b16 %v1651, %v1650
        %v1665 = vpack.c.b16 %v1653, %v1652
        %v1666 = vpack.c.b16 %v1655, %v1654
        %v1667 = vpack.c.b16 %v1657, %v1656
        %v1668 = vpack.c.b16 %v1659, %v1658
        %v1669 = vpack.c.b16 %v1661, %v1660
        %1678 = vmatprep.subr.bf16.mxu0 0
        %1679 = vmatpush1.bf16.msra.mxu0 %v1662
        %1680 = vmatprep.subr.bf16.mxu0 0
        %1681 = vmatpush1.bf16.msra.mxu0 %v1663
        %1682 = vmatprep.subr.bf16.mxu0 0
        %1683 = vmatpush1.bf16.msra.mxu0 %v1664
        %1684 = vmatprep.subr.bf16.mxu0 0
        %1685 = vmatpush1.bf16.msra.mxu0 %v1665
        %1686 = vmatprep.subr.bf16.mxu0 0
        %1687 = vmatpush1.bf16.msra.mxu0 %v1666
        %1688 = vmatprep.subr.bf16.mxu0 0
        %1689 = vmatpush1.bf16.msra.mxu0 %v1667
        %1690 = vmatprep.subr.bf16.mxu0 0
        %1691 = vmatpush1.bf16.msra.mxu0 %v1668
        %1692 = vmatprep.subr.bf16.mxu0 0
        %1693 = vmatpush1.bf16.msra.mxu0 %v1669
        %1694 = vmatprep.subr.bf16.mxu0 0
        %1695 = vmatpush1.bf16.msra.mxu0 0
        %1696 = vmatprep.subr.bf16.mxu0 0
        %1697 = vmatpush1.bf16.msra.mxu0 0
        %1698 = vmatprep.subr.bf16.mxu0 0
        %1699 = vmatpush1.bf16.msra.mxu0 0
        %1700 = vmatprep.subr.bf16.mxu0 0
        %1701 = vmatpush1.bf16.msra.mxu0 0
        %1702 = vmatprep.subr.bf16.mxu0 0
        %1703 = vmatpush1.bf16.msra.mxu0 0
        %1704 = vmatprep.subr.bf16.mxu0 0
        %1705 = vmatpush1.bf16.msra.mxu0 0
        %1706 = vmatprep.subr.bf16.mxu0 0
        %1707 = vmatpush1.bf16.msra.mxu0 0
        %1708 = vmatprep.subr.bf16.mxu0 0
        %1709 = vmatpush1.bf16.msra.mxu0 0
        %1710 = vmatprep.mubr.bf16.mxu0 0
        %1711 = vmatmul.mubr.bf16.gmra.mrb[0].mxu0 %v1592
        %v1712 = vpop.f32.mrb[0].mxu0
        %v1713 = vadd.f32 %v1629, %v1712
        %v1714 = vpop.f32.mrb[0].mxu0
        %v1715 = vpop.f32.mrb[0].mxu0
        %v1716 = vadd.f32 %v1629, %v1715
        %v1717 = vpop.f32.mrb[0].mxu0
        %1718 = vmatprep.mubr.bf16.mxu0 0
        %1719 = vmatmul.mubr.bf16.gmra.mrb[0].mxu0 %v1593
        %v1720 = vpop.f32.mrb[0].mxu0
        %v1721 = vadd.f32 %v1629, %v1720
        %v1722 = vpop.f32.mrb[0].mxu0
        %v1723 = vpop.f32.mrb[0].mxu0
        %v1724 = vadd.f32 %v1629, %v1723
        %v1725 = vpop.f32.mrb[0].mxu0
        %1726 = vmatprep.mubr.bf16.mxu0 0
        %1727 = vmatmul.mubr.bf16.gmra.mrb[0].mxu0 %v1594
        %v1728 = vpop.f32.mrb[0].mxu0
        %v1729 = vadd.f32 %v1629, %v1728
        %v1730 = vpop.f32.mrb[0].mxu0
        %v1731 = vpop.f32.mrb[0].mxu0
        %v1732 = vadd.f32 %v1629, %v1731
        %v1733 = vpop.f32.mrb[0].mxu0
        %1734 = vmatprep.mubr.bf16.mxu0 0
        %1735 = vmatmul.mubr.bf16.gmra.mrb[0].mxu0 %v1595
        %v1736 = vpop.f32.mrb[0].mxu0
        %v1737 = vadd.f32 %v1629, %v1736
        %v1738 = vpop.f32.mrb[0].mxu0
        %v1739 = vpop.f32.mrb[0].mxu0
        %v1740 = vadd.f32 %v1629, %v1739
        %v1741 = vpop.f32.mrb[0].mxu0
        %1742 = vmatprep.mubr.bf16.mxu0 0
        %1743 = vmatmul.mubr.bf16.gmra.mrb[0].mxu0 %v1596
        %v1744 = vpop.f32.mrb[0].mxu0
        %v1745 = vadd.f32 %v1629, %v1744
        %v1746 = vpop.f32.mrb[0].mxu0
        %v1747 = vpop.f32.mrb[0].mxu0
        %v1748 = vadd.f32 %v1629, %v1747
        %v1749 = vpop.f32.mrb[0].mxu0
        %1750 = vmatprep.mubr.bf16.mxu0 0
        %1751 = vmatmul.mubr.bf16.gmra.mrb[0].mxu0 %v1597
        %v1752 = vpop.f32.mrb[0].mxu0
        %v1753 = vadd.f32 %v1629, %v1752
        %v1754 = vpop.f32.mrb[0].mxu0
        %v1755 = vpop.f32.mrb[0].mxu0
        %v1756 = vadd.f32 %v1629, %v1755
        %v1757 = vpop.f32.mrb[0].mxu0
        %1758 = vmatprep.mubr.bf16.mxu0 0
        %1759 = vmatmul.mubr.bf16.gmra.mrb[0].mxu0 %v1598
        %v1760 = vpop.f32.mrb[0].mxu0
        %v1761 = vadd.f32 %v1629, %v1760
        %v1762 = vpop.f32.mrb[0].mxu0
        %v1763 = vpop.f32.mrb[0].mxu0
        %v1764 = vadd.f32 %v1629, %v1763
        %v1765 = vpop.f32.mrb[0].mxu0
        %1766 = vmatprep.mubr.bf16.mxu0 0
        %1767 = vmatmul.mubr.bf16.gmra.mrb[0].mxu0 %v1599
        %v1768 = vpop.f32.mrb[0].mxu0
        %v1769 = vadd.f32 %v1629, %v1768
        %v1770 = vpop.f32.mrb[0].mxu0
        %v1771 = vpop.f32.mrb[0].mxu0
        %v1772 = vadd.f32 %v1629, %v1771
        %v1773 = vpop.f32.mrb[0].mxu0
        %1774 = vmatprep.mubr.bf16.mxu0 0
        %1775 = vmatmul.mubr.bf16.gmra.mrb[0].mxu0 %v1600
        %v1776 = vpop.f32.mrb[0].mxu0
        %v1777 = vadd.f32 %v1629, %v1776
        %v1778 = vpop.f32.mrb[0].mxu0
        %v1779 = vpop.f32.mrb[0].mxu0
        %v1780 = vadd.f32 %v1629, %v1779
        %v1781 = vpop.f32.mrb[0].mxu0
        %1782 = vmatprep.mubr.bf16.mxu0 0
        %1783 = vmatmul.mubr.bf16.gmra.mrb[0].mxu0 %v1601
        %v1784 = vpop.f32.mrb[0].mxu0
        %v1785 = vadd.f32 %v1629, %v1784
        %v1786 = vpop.f32.mrb[0].mxu0
        %v1787 = vpop.f32.mrb[0].mxu0
        %v1788 = vadd.f32 %v1629, %v1787
        %v1789 = vpop.f32.mrb[0].mxu0
        %1790 = vmatprep.mubr.bf16.mxu0 0
        %1791 = vmatmul.mubr.bf16.gmra.mrb[0].mxu0 %v1602
        %v1792 = vpop.f32.mrb[0].mxu0
        %v1793 = vadd.f32 %v1629, %v1792
        %v1794 = vpop.f32.mrb[0].mxu0
        %v1795 = vpop.f32.mrb[0].mxu0
        %v1796 = vadd.f32 %v1629, %v1795
        %v1797 = vpop.f32.mrb[0].mxu0
        %1798 = vmatprep.mubr.bf16.mxu0 0
        %1799 = vmatmul.mubr.bf16.gmra.mrb[0].mxu0 %v1603
        %v1800 = vpop.f32.mrb[0].mxu0
        %v1801 = vadd.f32 %v1629, %v1800
        %v1802 = vpop.f32.mrb[0].mxu0
        %v1803 = vpop.f32.mrb[0].mxu0
        %v1804 = vadd.f32 %v1629, %v1803
        %v1805 = vpop.f32.mrb[0].mxu0
        %1806 = vmatprep.mubr.bf16.mxu0 0
        %1807 = vmatmul.mubr.bf16.gmra.mrb[0].mxu0 %v1604
        %v1808 = vpop.f32.mrb[0].mxu0
        %v1809 = vadd.f32 %v1629, %v1808
        %v1810 = vpop.f32.mrb[0].mxu0
        %v1811 = vpop.f32.mrb[0].mxu0
        %v1812 = vadd.f32 %v1629, %v1811
        %v1813 = vpop.f32.mrb[0].mxu0
        %1814 = vmatprep.mubr.bf16.mxu0 0
        %1815 = vmatmul.mubr.bf16.gmra.mrb[0].mxu0 %v1605
        %v1816 = vpop.f32.mrb[0].mxu0
        %v1817 = vadd.f32 %v1629, %v1816
        %v1818 = vpop.f32.mrb[0].mxu0
        %v1819 = vpop.f32.mrb[0].mxu0
        %v1820 = vadd.f32 %v1629, %v1819
        %v1821 = vpop.f32.mrb[0].mxu0
        %1822 = vmatprep.mubr.bf16.mxu0 0
        %1823 = vmatmul.mubr.bf16.gmra.mrb[0].mxu0 %v1606
        %v1824 = vpop.f32.mrb[0].mxu0
        %v1825 = vadd.f32 %v1629, %v1824
        %v1826 = vpop.f32.mrb[0].mxu0
        %v1827 = vpop.f32.mrb[0].mxu0
        %v1828 = vadd.f32 %v1629, %v1827
        %v1829 = vpop.f32.mrb[0].mxu0
        %1830 = vmatprep.mubr.bf16.mxu0 0
        %1831 = vmatmul.mubr.bf16.gmra.mrb[0].mxu0 %v1607
        %v1832 = vpop.f32.mrb[0].mxu0
        %v1833 = vadd.f32 %v1629, %v1832
        %v1834 = vpop.f32.mrb[0].mxu0
        %v1835 = vpop.f32.mrb[0].mxu0
        %v1836 = vadd.f32 %v1629, %v1835
        %v1837 = vpop.f32.mrb[0].mxu0
        %1838 = vdwg.mxu0
        %1839 = vst [vmem:[%s164] sm:$0xff] %v1713
        %1840 = vst [vmem:[%s164 + $0x8] sm:$0xff] %v1716
        %1841 = vst [vmem:[%s164 + $0x10] sm:$0xff] %v1721
        %1842 = vst [vmem:[%s164 + $0x18] sm:$0xff] %v1724
        %1843 = vst [vmem:[%s164 + $0x20] sm:$0xff] %v1729
        %1844 = vst [vmem:[%s164 + $0x28] sm:$0xff] %v1732
        %1845 = vst [vmem:[%s164 + $0x30] sm:$0xff] %v1737
        %1846 = vst [vmem:[%s164 + $0x38] sm:$0xff] %v1740
        %1847 = vst [vmem:[%s164 + $0x40] sm:$0xff] %v1745
        %1848 = vst [vmem:[%s164 + $0x48] sm:$0xff] %v1748
        %1849 = vst [vmem:[%s164 + $0x50] sm:$0xff] %v1753
        %1850 = vst [vmem:[%s164 + $0x58] sm:$0xff] %v1756
        %1851 = vst [vmem:[%s164 + $0x60] sm:$0xff] %v1761
        %1852 = vst [vmem:[%s164 + $0x68] sm:$0xff] %v1764
        %1853 = vst [vmem:[%s164 + $0x70] sm:$0xff] %v1769
        %1854 = vst [vmem:[%s164 + $0x78] sm:$0xff] %v1772
        %1855 = vst [vmem:[%s164 + $0x80] sm:$0xff] %v1777
        %1856 = vst [vmem:[%s164 + $0x88] sm:$0xff] %v1780
        %1857 = vst [vmem:[%s164 + $0x90] sm:$0xff] %v1785
        %1858 = vst [vmem:[%s164 + $0x98] sm:$0xff] %v1788
        %1859 = vst [vmem:[%s164 + $0xa0] sm:$0xff] %v1793
        %1860 = vst [vmem:[%s164 + $0xa8] sm:$0xff] %v1796
        %1861 = vst [vmem:[%s164 + $0xb0] sm:$0xff] %v1801
        %1862 = vst [vmem:[%s164 + $0xb8] sm:$0xff] %v1804
        %1863 = vst [vmem:[%s164 + $0xc0] sm:$0xff] %v1809
        %1864 = vst [vmem:[%s164 + $0xc8] sm:$0xff] %v1812
        %1865 = vst [vmem:[%s164 + $0xd0] sm:$0xff] %v1817
        %1866 = vst [vmem:[%s164 + $0xd8] sm:$0xff] %v1820
        %1867 = vst [vmem:[%s164 + $0xe0] sm:$0xff] %v1825
        %1868 = vst [vmem:[%s164 + $0xe8] sm:$0xff] %v1828
        %1869 = vst [vmem:[%s164 + $0xf0] sm:$0xff] %v1833
        %1870 = vst [vmem:[%s164 + $0xf8] sm:$0xff] %v1836
        %s1871 = sand.u32 %s93, 1
        %s1872 = scalar_lea.sflag [#allocation3], %s1871
        %s1873 = sand.u32 %s93, 1
        %s1874 = smul.addr %s1873, 256
        %s1875 = scalar_lea.vmem [#allocation2], %s1874
        // Predicated region
        $region33: #{tpu_custom_call.1} parent=31 // pred_check
          %p1876 = pneg %p103
        $region34: #{tpu_custom_call.1} parent=31 // pred_check_branch
          %1878 = sbr.rel (%p1876) target = $region36
        $region35: #{tpu_custom_call.1} parent=31 // pred_region
          %s1879 = smul.u32 32, %s17
          %s1881 = ssub.s32 4096, 4096
          %1882 = vsyncadd %s1872, %s1881
          %s1883 = smul.addr %s1879, 128
          %s1884 = scalar_lea.hbm %s3, %s1883
          %s1885 = sshll.u32 %s1875, 4
          %s1886 = int_to_ptr.vmem [resolvable:$true] %s1885
          %1891 = dma.vmem_to_hbm [thread:$0]  %s1886, 4096, %s1884, %s1872, 128, 128, 8
        $region36: #{tpu_custom_call.1} parent=31 // pred_fallthru
          _
      $region32: #{tpu_custom_call.1} parent=5 // pred_fallthru
        _
      %p1892 = scmp.le.s32.totalorder 2, %s12
      // Predicated region
      $region37: #{tpu_custom_call.1} parent=5 // pred_check
        %p1893 = pneg %p1892
      $region38: #{tpu_custom_call.1} parent=5 // pred_check_branch
        %1895 = sbr.rel (%p1893) target = $region40
      $region39: #{tpu_custom_call.1} parent=5 // pred_region
        %s1896 = ssub.s32 %s12, 2
        // Predicated region
        $region41: #{tpu_custom_call.1} parent=39 // pred_check
          %p1897 = pneg %p109
        $region42: #{tpu_custom_call.1} parent=39 // pred_check_branch
          %1899 = sbr.rel (%p1897) target = $region44
        $region43: #{tpu_custom_call.1} parent=39 // pred_region
          %s1900 = sand.u32 %s94, 1
          %s1901 = scalar_lea.sflag [#allocation3], %s1900
          %s1902 = sand.u32 %s94, 1
          %s1903 = smul.addr %s1902, 256
          %s1904 = scalar_lea.vmem [#allocation2], %s1903
          %1905 = dma.done %s1901, 4096
        $region44: #{tpu_custom_call.1} parent=39 // pred_fallthru
          _
      $region40: #{tpu_custom_call.1} parent=5 // pred_fallthru
        _
    $region6: #{tpu_custom_call.1} parent=1 // loop_footer
      %s16 = sadd.s32 1, %s12
    $region7: #{tpu_custom_call.1} parent=1 // loop_footer_branch
      %11 = sbr.rel target = $region3
    $region8: #{tpu_custom_call.1} parent=1 // loop_exit
      _
    %1906 = vsyncpa [#allocation3], 1
    %s1907 = scalar_lea.sflag [#allocation3], 1
    %1908 = vsyncpa %s1907, 1

</llo_original>
